<compile_context>
chip_gen: v7x
topology: tpu7x:2x2x1
jax: 0.10.0
libtpu: 0.0.40
codegen_flags: <defaults>
</compile_context>

<pallas_src>
import jax
import jax.numpy as jnp
from jax.experimental import pallas as pl
from jax.experimental.pallas import tpu as pltpu

# ----- "args" of sound_model, chosen small & deterministic -------------------
BATCH = 2            # args.batch_size
SEQ = 8              # args.max_sound_length
INPUT = 39           # fixed MFCC feature dim in the module
HIDDEN = 32          # args.hidden_dim
RNN_LAYER = 1        # args.rnn_layer (single layer -> LSTM dropout inactive)
BIDIRECTIONAL = False

IN_PAD = 128         # 39 input features zero-padded to one full lane tile
GATE_PAD = 128       # each of the 4 gates gets its own 128-lane group
BP = 8               # batch padded to one full sublane tile


# ----- Pallas kernel: full LSTM recurrence, emits last hidden state ----------
def lstm_last_kernel(x_ref, wih_ref, whh_ref, b_ref, out_ref, xg_scr):
    """
    x_ref  : (SEQ*BP, IN_PAD)        time-major rows (t*BP + b), batch/feature padded
    wih_ref: (IN_PAD, 4*GATE_PAD)    W_ih^T laid out in per-gate 128-lane groups
    whh_ref: (GATE_PAD, 4*GATE_PAD)  W_hh^T laid out in per-gate 128-lane groups
    b_ref  : (1, 4*GATE_PAD)         fused bias (b_ih + b_hh), per-gate groups
    out_ref: (BP, GATE_PAD)          h_T (only [:BATCH, :HIDDEN] is meaningful)
    xg_scr : (SEQ*BP, 4*GATE_PAD)    hoisted input projection scratch
    """
    n_bp = out_ref.shape[0]
    n_t = x_ref.shape[0] // n_bp
    G = GATE_PAD

    # Hoisted input projection + bias for the whole sequence: one MXU pass.
    # Removes T matmul pushes and T bias broadcasts from the serial chain.
    xg_scr[...] = (
        jnp.dot(x_ref[...], wih_ref[...], preferred_element_type=jnp.float32)
        + b_ref[...]
    )

    h = jnp.zeros((n_bp, G), jnp.float32)
    c = jnp.zeros((n_bp, G), jnp.float32)

    # Fully unrolled recurrence (T is a static Python int): every load has a
    # static offset, every gate slice is a whole 128-lane tile.
    for t in range(n_t):
        gates = xg_scr[pl.ds(t * n_bp, n_bp), :] + jnp.dot(
            h, whh_ref[...], preferred_element_type=jnp.float32
        )                                            # (BP, 4*G)
        # PyTorch LSTM gate order: input, forget, cell(g), output
        i_g = jax.nn.sigmoid(gates[:, 0:G])
        f_g = jax.nn.sigmoid(gates[:, G:2 * G])
        g_g = jnp.tanh(gates[:, 2 * G:3 * G])
        o_g = jax.nn.sigmoid(gates[:, 3 * G:4 * G])
        c = f_g * c + i_g * g_g
        h = o_g * jnp.tanh(c)

    out_ref[...] = h                                  # lane-dense final store


def sound_model_forward(mfcc, w_ih, w_hh, b_ih, b_hh):
    """mfcc: (B, T, 39) f32. Returns (B, HIDDEN) f32 == LSTM out[:, -1, :]."""
    B, T, F = mfcc.shape
    assert F == INPUT
    H, G = HIDDEN, GATE_PAD

    # ---- layout plumbing in plain JAX --------------------------------------
    # Time-major, pad batch -> BP sublanes and features -> IN_PAD lanes, flatten.
    x_tm = jnp.transpose(mfcc, (1, 0, 2)).astype(jnp.float32)          # (T, B, 39)
    x_tm = jnp.pad(x_tm, ((0, 0), (0, BP - B), (0, IN_PAD - INPUT)))   # (T, BP, 128)
    x_flat = x_tm.reshape(T * BP, IN_PAD)                              # (T*BP, 128)

    # Per-gate 128-lane groups; padded rows/lanes are zero so math stays exact.
    wih_p = jnp.zeros((IN_PAD, 4 * G), jnp.float32)
    whh_p = jnp.zeros((G, 4 * G), jnp.float32)
    bias_p = jnp.zeros((1, 4 * G), jnp.float32)
    fused_b = (b_ih + b_hh).astype(jnp.float32)
    for k in range(4):
        wih_p = wih_p.at[:INPUT, k * G:k * G + H].set(
            w_ih[k * H:(k + 1) * H, :].T.astype(jnp.float32))
        whh_p = whh_p.at[:H, k * G:k * G + H].set(
            w_hh[k * H:(k + 1) * H, :].T.astype(jnp.float32))
        bias_p = bias_p.at[0, k * G:k * G + H].set(fused_b[k * H:(k + 1) * H])

    out_pad = pl.pallas_call(
        lstm_last_kernel,
        out_shape=jax.ShapeDtypeStruct((BP, G), jnp.float32),
        grid=(1,),
        in_specs=[
            pl.BlockSpec((T * BP, IN_PAD), lambda i: (0, 0)),
            pl.BlockSpec((IN_PAD, 4 * G), lambda i: (0, 0)),
            pl.BlockSpec((G, 4 * G), lambda i: (0, 0)),
            pl.BlockSpec((1, 4 * G), lambda i: (0, 0)),
        ],
        out_specs=pl.BlockSpec((BP, G), lambda i: (0, 0)),
        scratch_shapes=[
            pltpu.VMEM((T * BP, 4 * G), jnp.float32),   # hoisted X@Wih + bias
        ],
        compiler_params=pltpu.CompilerParams(
            dimension_semantics=("arbitrary",)),
    )(x_flat, wih_p, whh_p, bias_p)

    return out_pad[:B, :H]


# ----- pure-JAX reference (same math) for a sanity check ---------------------
def reference_forward(mfcc, w_ih, w_hh, b_ih, b_hh):
    B, T, _ = mfcc.shape
    h = jnp.zeros((B, HIDDEN), jnp.float32)
    c = jnp.zeros((B, HIDDEN), jnp.float32)
    for t in range(T):
        g = mfcc[:, t, :] @ w_ih.T + h @ w_hh.T + b_ih + b_hh
        i_g = jax.nn.sigmoid(g[:, 0:HIDDEN])
        f_g = jax.nn.sigmoid(g[:, HIDDEN:2 * HIDDEN])
        g_g = jnp.tanh(g[:, 2 * HIDDEN:3 * HIDDEN])
        o_g = jax.nn.sigmoid(g[:, 3 * HIDDEN:4 * HIDDEN])
        c = f_g * c + i_g * g_g
        h = o_g * jnp.tanh(c)
    return h


if __name__ == "__main__":
    key = jax.random.PRNGKey(0)
    k_x, k1, k2, k3, k4 = jax.random.split(key, 5)

    # Deterministic synthetic parameters (PyTorch-style U(-1/sqrt(H), 1/sqrt(H))).
    s = 1.0 / jnp.sqrt(jnp.float32(HIDDEN))
    w_ih = jax.random.uniform(k1, (4 * HIDDEN, INPUT), jnp.float32, -s, s)
    w_hh = jax.random.uniform(k2, (4 * HIDDEN, HIDDEN), jnp.float32, -s, s)
    b_ih = jax.random.uniform(k3, (4 * HIDDEN,), jnp.float32, -s, s)
    b_hh = jax.random.uniform(k4, (4 * HIDDEN,), jnp.float32, -s, s)

    mfcc = jax.random.normal(k_x, (BATCH, SEQ, INPUT), jnp.float32)

    out = sound_model_forward(mfcc, w_ih, w_hh, b_ih, b_hh)
    out = jax.block_until_ready(out)

    ref = reference_forward(mfcc, w_ih, w_hh, b_ih, b_hh)
    assert out.shape == (BATCH, HIDDEN)
    assert jnp.allclose(out, ref, atol=1e-4, rtol=1e-4), "mismatch vs reference"

    print("KERNEL_OK")
</pallas_src>

<mosaic_0001>
module attributes {stable_mosaic.version = 11 : i64} {
  func.func @lstm_last_kernel(%arg0: i32, %arg1: memref<64x128xf32, #tpu.memory_space<vmem>>, %arg2: memref<128x512xf32, #tpu.memory_space<vmem>>, %arg3: memref<128x512xf32, #tpu.memory_space<vmem>>, %arg4: memref<1x512xf32, #tpu.memory_space<vmem>>, %arg5: memref<8x128xf32, #tpu.memory_space<vmem>>, %arg6: memref<64x512xf32, #tpu.memory_space<vmem>>) attributes {dimension_semantics = [#tpu.dimension_semantics<arbitrary>], iteration_bounds = array<i64: 1>, scalar_prefetch = 0 : i64, scratch_operands = 1 : i64, tpu.core_type = #tpu.core_type<tc>, window_params = [{pipeline_mode = #tpu.pipeline_mode<synchronous>, transform_indices = @transform_0, window_bounds = array<i64: 64, 128>}, {pipeline_mode = #tpu.pipeline_mode<synchronous>, transform_indices = @transform_1, window_bounds = array<i64: 128, 512>}, {pipeline_mode = #tpu.pipeline_mode<synchronous>, transform_indices = @transform_2, window_bounds = array<i64: 128, 512>}, {pipeline_mode = #tpu.pipeline_mode<synchronous>, transform_indices = @transform_3, window_bounds = array<i64: 1, 512>}, {pipeline_mode = #tpu.pipeline_mode<synchronous>, transform_indices = @transform_4, window_bounds = array<i64: 8, 128>}]} {
    %c0 = arith.constant 0 : index
    %c0_0 = arith.constant 0 : index
    %0 = vector.load %arg1[%c0, %c0_0] : memref<64x128xf32, #tpu.memory_space<vmem>>, vector<64x128xf32>
    %c0_1 = arith.constant 0 : index
    %c0_2 = arith.constant 0 : index
    %1 = vector.load %arg2[%c0_1, %c0_2] : memref<128x512xf32, #tpu.memory_space<vmem>>, vector<128x512xf32>
    %cst = arith.constant dense<0.000000e+00> : vector<64x512xf32>
    %2 = tpu.matmul %0, %1, %cst {dimension_numbers = #tpu.dot_dimension_numbers<[1], [0], [0], [1], [0, 0, 1, 1], [], []>} : vector<64x128xf32>, vector<128x512xf32>, vector<64x512xf32> -> vector<64x512xf32>
    %c0_3 = arith.constant 0 : index
    %c0_4 = arith.constant 0 : index
    %3 = vector.load %arg4[%c0_3, %c0_4] : memref<1x512xf32, #tpu.memory_space<vmem>>, vector<1x512xf32>
    %4 = vector.broadcast %3 : vector<1x512xf32> to vector<64x512xf32>
    %5 = arith.addf %2, %4 : vector<64x512xf32>
    %c0_5 = arith.constant 0 : index
    %c0_6 = arith.constant 0 : index
    %6 = vector.load %arg6[%c0_5, %c0_6] : memref<64x512xf32, #tpu.memory_space<vmem>>, vector<64x512xf32>
    tpu.vector_store %arg6[%c0_5, %c0_6], %5 {strides = array<i32>} : memref<64x512xf32, #tpu.memory_space<vmem>>, vector<64x512xf32>,
    %cst_7 = arith.constant 0.000000e+00 : f32
    %7 = vector.broadcast %cst_7 : f32 to vector<8x128xf32>
    %cst_8 = arith.constant 0.000000e+00 : f32
    %8 = vector.broadcast %cst_8 : f32 to vector<8x128xf32>
    %c0_9 = arith.constant 0 : index
    %c0_10 = arith.constant 0 : index
    %9 = vector.load %arg6[%c0_9, %c0_10] : memref<64x512xf32, #tpu.memory_space<vmem>>, vector<8x512xf32>
    %c0_11 = arith.constant 0 : index
    %c0_12 = arith.constant 0 : index
    %10 = vector.load %arg3[%c0_11, %c0_12] : memref<128x512xf32, #tpu.memory_space<vmem>>, vector<128x512xf32>
    %cst_13 = arith.constant dense<0.000000e+00> : vector<8x512xf32>
    %11 = tpu.matmul %7, %10, %cst_13 {dimension_numbers = #tpu.dot_dimension_numbers<[1], [0], [0], [1], [0, 0, 1, 1], [], []>} : vector<8x128xf32>, vector<128x512xf32>, vector<8x512xf32> -> vector<8x512xf32>
    %12 = arith.addf %9, %11 : vector<8x512xf32>
    %13 = vector.extract_strided_slice %12 {offsets = [0, 0], sizes = [8, 128], strides = [1, 1]} : vector<8x512xf32> to vector<8x128xf32>
    %14 = arith.negf %13 : vector<8x128xf32>
    %15 = math.exp %14 : vector<8x128xf32>
    %cst_14 = arith.constant 1.000000e+00 : f32
    %16 = vector.broadcast %cst_14 : f32 to vector<8x128xf32>
    %17 = arith.addf %16, %15 : vector<8x128xf32>
    %18 = arith.divf %16, %17 : vector<8x128xf32>
    %19 = vector.extract_strided_slice %12 {offsets = [0, 128], sizes = [8, 128], strides = [1, 1]} : vector<8x512xf32> to vector<8x128xf32>
    %20 = arith.negf %19 : vector<8x128xf32>
    %21 = math.exp %20 : vector<8x128xf32>
    %cst_15 = arith.constant 1.000000e+00 : f32
    %22 = vector.broadcast %cst_15 : f32 to vector<8x128xf32>
    %23 = arith.addf %22, %21 : vector<8x128xf32>
    %24 = arith.divf %22, %23 : vector<8x128xf32>
    %25 = vector.extract_strided_slice %12 {offsets = [0, 256], sizes = [8, 128], strides = [1, 1]} : vector<8x512xf32> to vector<8x128xf32>
    %26 = math.tanh %25 : vector<8x128xf32>
    %27 = vector.extract_strided_slice %12 {offsets = [0, 384], sizes = [8, 128], strides = [1, 1]} : vector<8x512xf32> to vector<8x128xf32>
    %28 = arith.negf %27 : vector<8x128xf32>
    %29 = math.exp %28 : vector<8x128xf32>
    %cst_16 = arith.constant 1.000000e+00 : f32
    %30 = vector.broadcast %cst_16 : f32 to vector<8x128xf32>
    %31 = arith.addf %30, %29 : vector<8x128xf32>
    %32 = arith.divf %30, %31 : vector<8x128xf32>
    %33 = arith.mulf %24, %8 : vector<8x128xf32>
    %34 = arith.mulf %18, %26 : vector<8x128xf32>
    %35 = arith.addf %33, %34 : vector<8x128xf32>
    %36 = math.tanh %35 : vector<8x128xf32>
    %37 = arith.mulf %32, %36 : vector<8x128xf32>
    %c8 = arith.constant 8 : index
    %c0_17 = arith.constant 0 : index
    %38 = vector.load %arg6[%c8, %c0_17] : memref<64x512xf32, #tpu.memory_space<vmem>>, vector<8x512xf32>
    %c0_18 = arith.constant 0 : index
    %c0_19 = arith.constant 0 : index
    %39 = vector.load %arg3[%c0_18, %c0_19] : memref<128x512xf32, #tpu.memory_space<vmem>>, vector<128x512xf32>
    %cst_20 = arith.constant dense<0.000000e+00> : vector<8x512xf32>
    %40 = tpu.matmul %37, %39, %cst_20 {dimension_numbers = #tpu.dot_dimension_numbers<[1], [0], [0], [1], [0, 0, 1, 1], [], []>} : vector<8x128xf32>, vector<128x512xf32>, vector<8x512xf32> -> vector<8x512xf32>
    %41 = arith.addf %38, %40 : vector<8x512xf32>
    %42 = vector.extract_strided_slice %41 {offsets = [0, 0], sizes = [8, 128], strides = [1, 1]} : vector<8x512xf32> to vector<8x128xf32>
    %43 = arith.negf %42 : vector<8x128xf32>
    %44 = math.exp %43 : vector<8x128xf32>
    %cst_21 = arith.constant 1.000000e+00 : f32
    %45 = vector.broadcast %cst_21 : f32 to vector<8x128xf32>
    %46 = arith.addf %45, %44 : vector<8x128xf32>
    %47 = arith.divf %45, %46 : vector<8x128xf32>
    %48 = vector.extract_strided_slice %41 {offsets = [0, 128], sizes = [8, 128], strides = [1, 1]} : vector<8x512xf32> to vector<8x128xf32>
    %49 = arith.negf %48 : vector<8x128xf32>
    %50 = math.exp %49 : vector<8x128xf32>
    %cst_22 = arith.constant 1.000000e+00 : f32
    %51 = vector.broadcast %cst_22 : f32 to vector<8x128xf32>
    %52 = arith.addf %51, %50 : vector<8x128xf32>
    %53 = arith.divf %51, %52 : vector<8x128xf32>
    %54 = vector.extract_strided_slice %41 {offsets = [0, 256], sizes = [8, 128], strides = [1, 1]} : vector<8x512xf32> to vector<8x128xf32>
    %55 = math.tanh %54 : vector<8x128xf32>
    %56 = vector.extract_strided_slice %41 {offsets = [0, 384], sizes = [8, 128], strides = [1, 1]} : vector<8x512xf32> to vector<8x128xf32>
    %57 = arith.negf %56 : vector<8x128xf32>
    %58 = math.exp %57 : vector<8x128xf32>
    %cst_23 = arith.constant 1.000000e+00 : f32
    %59 = vector.broadcast %cst_23 : f32 to vector<8x128xf32>
    %60 = arith.addf %59, %58 : vector<8x128xf32>
    %61 = arith.divf %59, %60 : vector<8x128xf32>
    %62 = arith.mulf %53, %35 : vector<8x128xf32>
    %63 = arith.mulf %47, %55 : vector<8x128xf32>
    %64 = arith.addf %62, %63 : vector<8x128xf32>
    %65 = math.tanh %64 : vector<8x128xf32>
    %66 = arith.mulf %61, %65 : vector<8x128xf32>
    %c16 = arith.constant 16 : index
    %c0_24 = arith.constant 0 : index
    %67 = vector.load %arg6[%c16, %c0_24] : memref<64x512xf32, #tpu.memory_space<vmem>>, vector<8x512xf32>
    %c0_25 = arith.constant 0 : index
    %c0_26 = arith.constant 0 : index
    %68 = vector.load %arg3[%c0_25, %c0_26] : memref<128x512xf32, #tpu.memory_space<vmem>>, vector<128x512xf32>
    %cst_27 = arith.constant dense<0.000000e+00> : vector<8x512xf32>
    %69 = tpu.matmul %66, %68, %cst_27 {dimension_numbers = #tpu.dot_dimension_numbers<[1], [0], [0], [1], [0, 0, 1, 1], [], []>} : vector<8x128xf32>, vector<128x512xf32>, vector<8x512xf32> -> vector<8x512xf32>
    %70 = arith.addf %67, %69 : vector<8x512xf32>
    %71 = vector.extract_strided_slice %70 {offsets = [0, 0], sizes = [8, 128], strides = [1, 1]} : vector<8x512xf32> to vector<8x128xf32>
    %72 = arith.negf %71 : vector<8x128xf32>
    %73 = math.exp %72 : vector<8x128xf32>
    %cst_28 = arith.constant 1.000000e+00 : f32
    %74 = vector.broadcast %cst_28 : f32 to vector<8x128xf32>
    %75 = arith.addf %74, %73 : vector<8x128xf32>
    %76 = arith.divf %74, %75 : vector<8x128xf32>
    %77 = vector.extract_strided_slice %70 {offsets = [0, 128], sizes = [8, 128], strides = [1, 1]} : vector<8x512xf32> to vector<8x128xf32>
    %78 = arith.negf %77 : vector<8x128xf32>
    %79 = math.exp %78 : vector<8x128xf32>
    %cst_29 = arith.constant 1.000000e+00 : f32
    %80 = vector.broadcast %cst_29 : f32 to vector<8x128xf32>
    %81 = arith.addf %80, %79 : vector<8x128xf32>
    %82 = arith.divf %80, %81 : vector<8x128xf32>
    %83 = vector.extract_strided_slice %70 {offsets = [0, 256], sizes = [8, 128], strides = [1, 1]} : vector<8x512xf32> to vector<8x128xf32>
    %84 = math.tanh %83 : vector<8x128xf32>
    %85 = vector.extract_strided_slice %70 {offsets = [0, 384], sizes = [8, 128], strides = [1, 1]} : vector<8x512xf32> to vector<8x128xf32>
    %86 = arith.negf %85 : vector<8x128xf32>
    %87 = math.exp %86 : vector<8x128xf32>
    %cst_30 = arith.constant 1.000000e+00 : f32
    %88 = vector.broadcast %cst_30 : f32 to vector<8x128xf32>
    %89 = arith.addf %88, %87 : vector<8x128xf32>
    %90 = arith.divf %88, %89 : vector<8x128xf32>
    %91 = arith.mulf %82, %64 : vector<8x128xf32>
    %92 = arith.mulf %76, %84 : vector<8x128xf32>
    %93 = arith.addf %91, %92 : vector<8x128xf32>
    %94 = math.tanh %93 : vector<8x128xf32>
    %95 = arith.mulf %90, %94 : vector<8x128xf32>
    %c24 = arith.constant 24 : index
    %c0_31 = arith.constant 0 : index
    %96 = vector.load %arg6[%c24, %c0_31] : memref<64x512xf32, #tpu.memory_space<vmem>>, vector<8x512xf32>
    %c0_32 = arith.constant 0 : index
    %c0_33 = arith.constant 0 : index
    %97 = vector.load %arg3[%c0_32, %c0_33] : memref<128x512xf32, #tpu.memory_space<vmem>>, vector<128x512xf32>
    %cst_34 = arith.constant dense<0.000000e+00> : vector<8x512xf32>
    %98 = tpu.matmul %95, %97, %cst_34 {dimension_numbers = #tpu.dot_dimension_numbers<[1], [0], [0], [1], [0, 0, 1, 1], [], []>} : vector<8x128xf32>, vector<128x512xf32>, vector<8x512xf32> -> vector<8x512xf32>
    %99 = arith.addf %96, %98 : vector<8x512xf32>
    %100 = vector.extract_strided_slice %99 {offsets = [0, 0], sizes = [8, 128], strides = [1, 1]} : vector<8x512xf32> to vector<8x128xf32>
    %101 = arith.negf %100 : vector<8x128xf32>
    %102 = math.exp %101 : vector<8x128xf32>
    %cst_35 = arith.constant 1.000000e+00 : f32
    %103 = vector.broadcast %cst_35 : f32 to vector<8x128xf32>
    %104 = arith.addf %103, %102 : vector<8x128xf32>
    %105 = arith.divf %103, %104 : vector<8x128xf32>
    %106 = vector.extract_strided_slice %99 {offsets = [0, 128], sizes = [8, 128], strides = [1, 1]} : vector<8x512xf32> to vector<8x128xf32>
    %107 = arith.negf %106 : vector<8x128xf32>
    %108 = math.exp %107 : vector<8x128xf32>
    %cst_36 = arith.constant 1.000000e+00 : f32
    %109 = vector.broadcast %cst_36 : f32 to vector<8x128xf32>
    %110 = arith.addf %109, %108 : vector<8x128xf32>
    %111 = arith.divf %109, %110 : vector<8x128xf32>
    %112 = vector.extract_strided_slice %99 {offsets = [0, 256], sizes = [8, 128], strides = [1, 1]} : vector<8x512xf32> to vector<8x128xf32>
    %113 = math.tanh %112 : vector<8x128xf32>
    %114 = vector.extract_strided_slice %99 {offsets = [0, 384], sizes = [8, 128], strides = [1, 1]} : vector<8x512xf32> to vector<8x128xf32>
    %115 = arith.negf %114 : vector<8x128xf32>
    %116 = math.exp %115 : vector<8x128xf32>
    %cst_37 = arith.constant 1.000000e+00 : f32
    %117 = vector.broadcast %cst_37 : f32 to vector<8x128xf32>
    %118 = arith.addf %117, %116 : vector<8x128xf32>
    %119 = arith.divf %117, %118 : vector<8x128xf32>
    %120 = arith.mulf %111, %93 : vector<8x128xf32>
    %121 = arith.mulf %105, %113 : vector<8x128xf32>
    %122 = arith.addf %120, %121 : vector<8x128xf32>
    %123 = math.tanh %122 : vector<8x128xf32>
    %124 = arith.mulf %119, %123 : vector<8x128xf32>
    %c32 = arith.constant 32 : index
    %c0_38 = arith.constant 0 : index
    %125 = vector.load %arg6[%c32, %c0_38] : memref<64x512xf32, #tpu.memory_space<vmem>>, vector<8x512xf32>
    %c0_39 = arith.constant 0 : index
    %c0_40 = arith.constant 0 : index
    %126 = vector.load %arg3[%c0_39, %c0_40] : memref<128x512xf32, #tpu.memory_space<vmem>>, vector<128x512xf32>
    %cst_41 = arith.constant dense<0.000000e+00> : vector<8x512xf32>
    %127 = tpu.matmul %124, %126, %cst_41 {dimension_numbers = #tpu.dot_dimension_numbers<[1], [0], [0], [1], [0, 0, 1, 1], [], []>} : vector<8x128xf32>, vector<128x512xf32>, vector<8x512xf32> -> vector<8x512xf32>
    %128 = arith.addf %125, %127 : vector<8x512xf32>
    %129 = vector.extract_strided_slice %128 {offsets = [0, 0], sizes = [8, 128], strides = [1, 1]} : vector<8x512xf32> to vector<8x128xf32>
    %130 = arith.negf %129 : vector<8x128xf32>
    %131 = math.exp %130 : vector<8x128xf32>
    %cst_42 = arith.constant 1.000000e+00 : f32
    %132 = vector.broadcast %cst_42 : f32 to vector<8x128xf32>
    %133 = arith.addf %132, %131 : vector<8x128xf32>
    %134 = arith.divf %132, %133 : vector<8x128xf32>
    %135 = vector.extract_strided_slice %128 {offsets = [0, 128], sizes = [8, 128], strides = [1, 1]} : vector<8x512xf32> to vector<8x128xf32>
    %136 = arith.negf %135 : vector<8x128xf32>
    %137 = math.exp %136 : vector<8x128xf32>
    %cst_43 = arith.constant 1.000000e+00 : f32
    %138 = vector.broadcast %cst_43 : f32 to vector<8x128xf32>
    %139 = arith.addf %138, %137 : vector<8x128xf32>
    %140 = arith.divf %138, %139 : vector<8x128xf32>
    %141 = vector.extract_strided_slice %128 {offsets = [0, 256], sizes = [8, 128], strides = [1, 1]} : vector<8x512xf32> to vector<8x128xf32>
    %142 = math.tanh %141 : vector<8x128xf32>
    %143 = vector.extract_strided_slice %128 {offsets = [0, 384], sizes = [8, 128], strides = [1, 1]} : vector<8x512xf32> to vector<8x128xf32>
    %144 = arith.negf %143 : vector<8x128xf32>
    %145 = math.exp %144 : vector<8x128xf32>
    %cst_44 = arith.constant 1.000000e+00 : f32
    %146 = vector.broadcast %cst_44 : f32 to vector<8x128xf32>
    %147 = arith.addf %146, %145 : vector<8x128xf32>
    %148 = arith.divf %146, %147 : vector<8x128xf32>
    %149 = arith.mulf %140, %122 : vector<8x128xf32>
    %150 = arith.mulf %134, %142 : vector<8x128xf32>
    %151 = arith.addf %149, %150 : vector<8x128xf32>
    %152 = math.tanh %151 : vector<8x128xf32>
    %153 = arith.mulf %148, %152 : vector<8x128xf32>
    %c40 = arith.constant 40 : index
    %c0_45 = arith.constant 0 : index
    %154 = vector.load %arg6[%c40, %c0_45] : memref<64x512xf32, #tpu.memory_space<vmem>>, vector<8x512xf32>
    %c0_46 = arith.constant 0 : index
    %c0_47 = arith.constant 0 : index
    %155 = vector.load %arg3[%c0_46, %c0_47] : memref<128x512xf32, #tpu.memory_space<vmem>>, vector<128x512xf32>
    %cst_48 = arith.constant dense<0.000000e+00> : vector<8x512xf32>
    %156 = tpu.matmul %153, %155, %cst_48 {dimension_numbers = #tpu.dot_dimension_numbers<[1], [0], [0], [1], [0, 0, 1, 1], [], []>} : vector<8x128xf32>, vector<128x512xf32>, vector<8x512xf32> -> vector<8x512xf32>
    %157 = arith.addf %154, %156 : vector<8x512xf32>
    %158 = vector.extract_strided_slice %157 {offsets = [0, 0], sizes = [8, 128], strides = [1, 1]} : vector<8x512xf32> to vector<8x128xf32>
    %159 = arith.negf %158 : vector<8x128xf32>
    %160 = math.exp %159 : vector<8x128xf32>
    %cst_49 = arith.constant 1.000000e+00 : f32
    %161 = vector.broadcast %cst_49 : f32 to vector<8x128xf32>
    %162 = arith.addf %161, %160 : vector<8x128xf32>
    %163 = arith.divf %161, %162 : vector<8x128xf32>
    %164 = vector.extract_strided_slice %157 {offsets = [0, 128], sizes = [8, 128], strides = [1, 1]} : vector<8x512xf32> to vector<8x128xf32>
    %165 = arith.negf %164 : vector<8x128xf32>
    %166 = math.exp %165 : vector<8x128xf32>
    %cst_50 = arith.constant 1.000000e+00 : f32
    %167 = vector.broadcast %cst_50 : f32 to vector<8x128xf32>
    %168 = arith.addf %167, %166 : vector<8x128xf32>
    %169 = arith.divf %167, %168 : vector<8x128xf32>
    %170 = vector.extract_strided_slice %157 {offsets = [0, 256], sizes = [8, 128], strides = [1, 1]} : vector<8x512xf32> to vector<8x128xf32>
    %171 = math.tanh %170 : vector<8x128xf32>
    %172 = vector.extract_strided_slice %157 {offsets = [0, 384], sizes = [8, 128], strides = [1, 1]} : vector<8x512xf32> to vector<8x128xf32>
    %173 = arith.negf %172 : vector<8x128xf32>
    %174 = math.exp %173 : vector<8x128xf32>
    %cst_51 = arith.constant 1.000000e+00 : f32
    %175 = vector.broadcast %cst_51 : f32 to vector<8x128xf32>
    %176 = arith.addf %175, %174 : vector<8x128xf32>
    %177 = arith.divf %175, %176 : vector<8x128xf32>
    %178 = arith.mulf %169, %151 : vector<8x128xf32>
    %179 = arith.mulf %163, %171 : vector<8x128xf32>
    %180 = arith.addf %178, %179 : vector<8x128xf32>
    %181 = math.tanh %180 : vector<8x128xf32>
    %182 = arith.mulf %177, %181 : vector<8x128xf32>
    %c48 = arith.constant 48 : index
    %c0_52 = arith.constant 0 : index
    %183 = vector.load %arg6[%c48, %c0_52] : memref<64x512xf32, #tpu.memory_space<vmem>>, vector<8x512xf32>
    %c0_53 = arith.constant 0 : index
    %c0_54 = arith.constant 0 : index
    %184 = vector.load %arg3[%c0_53, %c0_54] : memref<128x512xf32, #tpu.memory_space<vmem>>, vector<128x512xf32>
    %cst_55 = arith.constant dense<0.000000e+00> : vector<8x512xf32>
    %185 = tpu.matmul %182, %184, %cst_55 {dimension_numbers = #tpu.dot_dimension_numbers<[1], [0], [0], [1], [0, 0, 1, 1], [], []>} : vector<8x128xf32>, vector<128x512xf32>, vector<8x512xf32> -> vector<8x512xf32>
    %186 = arith.addf %183, %185 : vector<8x512xf32>
    %187 = vector.extract_strided_slice %186 {offsets = [0, 0], sizes = [8, 128], strides = [1, 1]} : vector<8x512xf32> to vector<8x128xf32>
    %188 = arith.negf %187 : vector<8x128xf32>
    %189 = math.exp %188 : vector<8x128xf32>
    %cst_56 = arith.constant 1.000000e+00 : f32
    %190 = vector.broadcast %cst_56 : f32 to vector<8x128xf32>
    %191 = arith.addf %190, %189 : vector<8x128xf32>
    %192 = arith.divf %190, %191 : vector<8x128xf32>
    %193 = vector.extract_strided_slice %186 {offsets = [0, 128], sizes = [8, 128], strides = [1, 1]} : vector<8x512xf32> to vector<8x128xf32>
    %194 = arith.negf %193 : vector<8x128xf32>
    %195 = math.exp %194 : vector<8x128xf32>
    %cst_57 = arith.constant 1.000000e+00 : f32
    %196 = vector.broadcast %cst_57 : f32 to vector<8x128xf32>
    %197 = arith.addf %196, %195 : vector<8x128xf32>
    %198 = arith.divf %196, %197 : vector<8x128xf32>
    %199 = vector.extract_strided_slice %186 {offsets = [0, 256], sizes = [8, 128], strides = [1, 1]} : vector<8x512xf32> to vector<8x128xf32>
    %200 = math.tanh %199 : vector<8x128xf32>
    %201 = vector.extract_strided_slice %186 {offsets = [0, 384], sizes = [8, 128], strides = [1, 1]} : vector<8x512xf32> to vector<8x128xf32>
    %202 = arith.negf %201 : vector<8x128xf32>
    %203 = math.exp %202 : vector<8x128xf32>
    %cst_58 = arith.constant 1.000000e+00 : f32
    %204 = vector.broadcast %cst_58 : f32 to vector<8x128xf32>
    %205 = arith.addf %204, %203 : vector<8x128xf32>
    %206 = arith.divf %204, %205 : vector<8x128xf32>
    %207 = arith.mulf %198, %180 : vector<8x128xf32>
    %208 = arith.mulf %192, %200 : vector<8x128xf32>
    %209 = arith.addf %207, %208 : vector<8x128xf32>
    %210 = math.tanh %209 : vector<8x128xf32>
    %211 = arith.mulf %206, %210 : vector<8x128xf32>
    %c56 = arith.constant 56 : index
    %c0_59 = arith.constant 0 : index
    %212 = vector.load %arg6[%c56, %c0_59] : memref<64x512xf32, #tpu.memory_space<vmem>>, vector<8x512xf32>
    %c0_60 = arith.constant 0 : index
    %c0_61 = arith.constant 0 : index
    %213 = vector.load %arg3[%c0_60, %c0_61] : memref<128x512xf32, #tpu.memory_space<vmem>>, vector<128x512xf32>
    %cst_62 = arith.constant dense<0.000000e+00> : vector<8x512xf32>
    %214 = tpu.matmul %211, %213, %cst_62 {dimension_numbers = #tpu.dot_dimension_numbers<[1], [0], [0], [1], [0, 0, 1, 1], [], []>} : vector<8x128xf32>, vector<128x512xf32>, vector<8x512xf32> -> vector<8x512xf32>
    %215 = arith.addf %212, %214 : vector<8x512xf32>
    %216 = vector.extract_strided_slice %215 {offsets = [0, 0], sizes = [8, 128], strides = [1, 1]} : vector<8x512xf32> to vector<8x128xf32>
    %217 = arith.negf %216 : vector<8x128xf32>
    %218 = math.exp %217 : vector<8x128xf32>
    %cst_63 = arith.constant 1.000000e+00 : f32
    %219 = vector.broadcast %cst_63 : f32 to vector<8x128xf32>
    %220 = arith.addf %219, %218 : vector<8x128xf32>
    %221 = arith.divf %219, %220 : vector<8x128xf32>
    %222 = vector.extract_strided_slice %215 {offsets = [0, 128], sizes = [8, 128], strides = [1, 1]} : vector<8x512xf32> to vector<8x128xf32>
    %223 = arith.negf %222 : vector<8x128xf32>
    %224 = math.exp %223 : vector<8x128xf32>
    %cst_64 = arith.constant 1.000000e+00 : f32
    %225 = vector.broadcast %cst_64 : f32 to vector<8x128xf32>
    %226 = arith.addf %225, %224 : vector<8x128xf32>
    %227 = arith.divf %225, %226 : vector<8x128xf32>
    %228 = vector.extract_strided_slice %215 {offsets = [0, 256], sizes = [8, 128], strides = [1, 1]} : vector<8x512xf32> to vector<8x128xf32>
    %229 = math.tanh %228 : vector<8x128xf32>
    %230 = vector.extract_strided_slice %215 {offsets = [0, 384], sizes = [8, 128], strides = [1, 1]} : vector<8x512xf32> to vector<8x128xf32>
    %231 = arith.negf %230 : vector<8x128xf32>
    %232 = math.exp %231 : vector<8x128xf32>
    %cst_65 = arith.constant 1.000000e+00 : f32
    %233 = vector.broadcast %cst_65 : f32 to vector<8x128xf32>
    %234 = arith.addf %233, %232 : vector<8x128xf32>
    %235 = arith.divf %233, %234 : vector<8x128xf32>
    %236 = arith.mulf %227, %209 : vector<8x128xf32>
    %237 = arith.mulf %221, %229 : vector<8x128xf32>
    %238 = arith.addf %236, %237 : vector<8x128xf32>
    %239 = math.tanh %238 : vector<8x128xf32>
    %240 = arith.mulf %235, %239 : vector<8x128xf32>
    %c0_66 = arith.constant 0 : index
    %c0_67 = arith.constant 0 : index
    %241 = vector.load %arg5[%c0_66, %c0_67] : memref<8x128xf32, #tpu.memory_space<vmem>>, vector<8x128xf32>
    tpu.vector_store %arg5[%c0_66, %c0_67], %240 {strides = array<i32>} : memref<8x128xf32, #tpu.memory_space<vmem>>, vector<8x128xf32>,
    return
  }
  func.func @transform_0(%arg0: i32) -> (i32, i32) {
    %c0_i32 = arith.constant 0 : i32
    %c0_i32_0 = arith.constant 0 : i32
    %c0_i32_1 = arith.constant 0 : i32
    return %c0_i32, %c0_i32_0 : i32, i32
  }
  func.func @transform_1(%arg0: i32) -> (i32, i32) {
    %c0_i32 = arith.constant 0 : i32
    %c0_i32_0 = arith.constant 0 : i32
    %c0_i32_1 = arith.constant 0 : i32
    return %c0_i32, %c0_i32_0 : i32, i32
  }
  func.func @transform_2(%arg0: i32) -> (i32, i32) {
    %c0_i32 = arith.constant 0 : i32
    %c0_i32_0 = arith.constant 0 : i32
    %c0_i32_1 = arith.constant 0 : i32
    return %c0_i32, %c0_i32_0 : i32, i32
  }
  func.func @transform_3(%arg0: i32) -> (i32, i32) {
    %c0_i32 = arith.constant 0 : i32
    %c0_i32_0 = arith.constant 0 : i32
    %c0_i32_1 = arith.constant 0 : i32
    return %c0_i32, %c0_i32_0 : i32, i32
  }
  func.func @transform_4(%arg0: i32) -> (i32, i32) {
    %c0_i32 = arith.constant 0 : i32
    %c0_i32_0 = arith.constant 0 : i32
    %c0_i32_1 = arith.constant 0 : i32
    return %c0_i32, %c0_i32_0 : i32, i32
  }
}

</mosaic_0001>

<llo_original>
// kernel: tpu_custom_call.1
$region0: #{tpu_custom_call.1}
  #allocation0 [shape = 'u32[]', space=smem, size = 0x4, offset = 0x4, fixed_abs, tag = 'smem constant byte address 0x4 - core index']
  #allocation1 [shape = 'u32[144,128]{1,0:T(1,128)}', space=vmem, size = 0x12000, scoped, tag = 'internal scratch']
  #allocation2 [shape = 'f32[64,512]{1,0:T(8,128)}', space=vmem, size = 0x20000, scoped, tag = 'scratch operand']
  %s0 = inlined_call_operand.hbm [shape: f32[64,128], index: 0, kind: input, shape index: {}]
  %s1 = inlined_call_operand.hbm [shape: f32[128,512], index: 1, kind: input, shape index: {}]
  %s2 = inlined_call_operand.hbm [shape: f32[128,512], index: 2, kind: input, shape index: {}]
  %s3 = inlined_call_operand.vmem [shape: f32[1,512], index: 3, kind: input, shape index: {}]
  %s4 = inlined_call_operand.hbm [shape: f32[8,128], index: 4, kind: output, shape index: {}]
  %s5 = sld [smem:[#allocation0]]
  $region38: #{tpu_custom_call.1} parent=0
    _
  %s7 = ssub.s32 1, %s5
  %s8 = scalar_select 0, %s7, %s5
  $region1: #{tpu_custom_call.1} parent=0
    #allocation3 [shape = 'u8[32768]{0}', space=vmem, size = 0x8000, scoped, tag = 'input window, operand 0, single buffered']
    #allocation4 [shape = 's32[1]{0}', space=sflag, size = 0x4, scoped, tag = 'scoped memory for tpu_custom_call.1']
    #allocation5 [shape = 's32[1]{0}', space=sflag, size = 0x4, scoped, tag = 'scoped memory for tpu_custom_call.1']
    #allocation6 [shape = 'u8[262144]{0}', space=vmem, size = 0x40000, scoped, tag = 'input window, operand 1, single buffered']
    #allocation7 [shape = 's32[1]{0}', space=sflag, size = 0x4, scoped, tag = 'scoped memory for tpu_custom_call.1']
    #allocation8 [shape = 'u8[262144]{0}', space=vmem, size = 0x40000, scoped, tag = 'input window, operand 2, single buffered']
    #allocation9 [shape = 'u8[4096]{0}', space=vmem, size = 0x1000, scoped, tag = 'output window, operand 0, single buffered']
    %9 = vsyncpa [#allocation4], 0
    %10 = vsyncpa [#allocation7], 0
    %11 = vsyncpa [#allocation5], 0
    // Predicated region
    $region2: #{tpu_custom_call.1} parent=1 // pred_check
      _
    $region3: #{tpu_custom_call.1} parent=1 // pred_check_branch
      %13 = sbr.rel (0) target = $region5
    $region4: #{tpu_custom_call.1} parent=1 // pred_region
      %s15 = ssub.s32 1024, 1024
      %16 = vsyncadd [#allocation4], %s15
      %s17 = sshll.u32 [#allocation3], 4
      %s18 = int_to_ptr.vmem [resolvable:$true] %s17
      %23 = dma.hbm_to_vmem [thread:$0]  %s0, 1024, %s18, [#allocation4], 128, 128, 8
    $region5: #{tpu_custom_call.1} parent=1 // pred_fallthru
      _
    // Predicated region
    $region6: #{tpu_custom_call.1} parent=1 // pred_check
      _
    $region7: #{tpu_custom_call.1} parent=1 // pred_check_branch
      %25 = sbr.rel (0) target = $region9
    $region8: #{tpu_custom_call.1} parent=1 // pred_region
      %s27 = ssub.s32 8192, 8192
      %28 = vsyncadd [#allocation7], %s27
      %s29 = sshll.u32 [#allocation6], 4
      %s30 = int_to_ptr.vmem [resolvable:$true] %s29
      %35 = dma.hbm_to_vmem [thread:$0]  %s1, 8192, %s30, [#allocation7], 512, 512, 32
    $region9: #{tpu_custom_call.1} parent=1 // pred_fallthru
      _
    // Predicated region
    $region10: #{tpu_custom_call.1} parent=1 // pred_check
      _
    $region11: #{tpu_custom_call.1} parent=1 // pred_check_branch
      %37 = sbr.rel (0) target = $region13
    $region12: #{tpu_custom_call.1} parent=1 // pred_region
      %s39 = ssub.s32 8192, 8192
      %40 = vsyncadd [#allocation7], %s39
      %s41 = sshll.u32 [#allocation8], 4
      %s42 = int_to_ptr.vmem [resolvable:$true] %s41
      %47 = dma.hbm_to_vmem [thread:$0]  %s2, 8192, %s42, [#allocation7], 512, 512, 32
    $region13: #{tpu_custom_call.1} parent=1 // pred_fallthru
      _
    // Predicated region
    $region14: #{tpu_custom_call.1} parent=1 // pred_check
      _
    $region15: #{tpu_custom_call.1} parent=1 // pred_check_branch
      %49 = sbr.rel (0) target = $region17
    $region16: #{tpu_custom_call.1} parent=1 // pred_region
      _
    $region17: #{tpu_custom_call.1} parent=1 // pred_fallthru
      _
    // Predicated region
    $region18: #{tpu_custom_call.1} parent=1 // pred_check
      _
    $region19: #{tpu_custom_call.1} parent=1 // pred_check_branch
      %51 = sbr.rel (0) target = $region21
    $region20: #{tpu_custom_call.1} parent=1 // pred_region
      %52 = dma.done [#allocation4], 1024
    $region21: #{tpu_custom_call.1} parent=1 // pred_fallthru
      _
    // Predicated region
    $region22: #{tpu_custom_call.1} parent=1 // pred_check
      _
    $region23: #{tpu_custom_call.1} parent=1 // pred_check_branch
      %54 = sbr.rel (0) target = $region25
    $region24: #{tpu_custom_call.1} parent=1 // pred_region
      %55 = dma.done [#allocation7], 8192
    $region25: #{tpu_custom_call.1} parent=1 // pred_fallthru
      _
    // Predicated region
    $region26: #{tpu_custom_call.1} parent=1 // pred_check
      _
    $region27: #{tpu_custom_call.1} parent=1 // pred_check_branch
      %57 = sbr.rel (0) target = $region29
    $region28: #{tpu_custom_call.1} parent=1 // pred_region
      %58 = dma.done [#allocation7], 8192
    $region29: #{tpu_custom_call.1} parent=1 // pred_fallthru
      _
    %v59 = vld [vmem:[#allocation3] sm:$0xff]
    %v60 = vld [vmem:[#allocation3 + $0x8] sm:$0xff]
    %v61 = vld [vmem:[#allocation3 + $0x10] sm:$0xff]
    %v62 = vld [vmem:[#allocation3 + $0x18] sm:$0xff]
    %v63 = vld [vmem:[#allocation3 + $0x20] sm:$0xff]
    %v64 = vld [vmem:[#allocation3 + $0x28] sm:$0xff]
    %v65 = vld [vmem:[#allocation3 + $0x30] sm:$0xff]
    %v66 = vld [vmem:[#allocation3 + $0x38] sm:$0xff]
    %v67 = vld [vmem:[#allocation6] sm:$0xff]
    %v68 = vld [vmem:[#allocation6 + $0x8] sm:$0xff]
    %v69 = vld [vmem:[#allocation6 + $0x10] sm:$0xff]
    %v70 = vld [vmem:[#allocation6 + $0x18] sm:$0xff]
    %v71 = vld [vmem:[#allocation6 + $0x20] sm:$0xff]
    %v72 = vld [vmem:[#allocation6 + $0x28] sm:$0xff]
    %v73 = vld [vmem:[#allocation6 + $0x30] sm:$0xff]
    %v74 = vld [vmem:[#allocation6 + $0x38] sm:$0xff]
    %v75 = vld [vmem:[#allocation6 + $0x40] sm:$0xff]
    %v76 = vld [vmem:[#allocation6 + $0x48] sm:$0xff]
    %v77 = vld [vmem:[#allocation6 + $0x50] sm:$0xff]
    %v78 = vld [vmem:[#allocation6 + $0x58] sm:$0xff]
    %v79 = vld [vmem:[#allocation6 + $0x60] sm:$0xff]
    %v80 = vld [vmem:[#allocation6 + $0x68] sm:$0xff]
    %v81 = vld [vmem:[#allocation6 + $0x70] sm:$0xff]
    %v82 = vld [vmem:[#allocation6 + $0x78] sm:$0xff]
    %v83 = vld [vmem:[#allocation6 + $0x80] sm:$0xff]
    %v84 = vld [vmem:[#allocation6 + $0x88] sm:$0xff]
    %v85 = vld [vmem:[#allocation6 + $0x90] sm:$0xff]
    %v86 = vld [vmem:[#allocation6 + $0x98] sm:$0xff]
    %v87 = vld [vmem:[#allocation6 + $0xa0] sm:$0xff]
    %v88 = vld [vmem:[#allocation6 + $0xa8] sm:$0xff]
    %v89 = vld [vmem:[#allocation6 + $0xb0] sm:$0xff]
    %v90 = vld [vmem:[#allocation6 + $0xb8] sm:$0xff]
    %v91 = vld [vmem:[#allocation6 + $0xc0] sm:$0xff]
    %v92 = vld [vmem:[#allocation6 + $0xc8] sm:$0xff]
    %v93 = vld [vmem:[#allocation6 + $0xd0] sm:$0xff]
    %v94 = vld [vmem:[#allocation6 + $0xd8] sm:$0xff]
    %v95 = vld [vmem:[#allocation6 + $0xe0] sm:$0xff]
    %v96 = vld [vmem:[#allocation6 + $0xe8] sm:$0xff]
    %v97 = vld [vmem:[#allocation6 + $0xf0] sm:$0xff]
    %v98 = vld [vmem:[#allocation6 + $0xf8] sm:$0xff]
    %v99 = vld [vmem:[#allocation6 + $0x100] sm:$0xff]
    %v100 = vld [vmem:[#allocation6 + $0x108] sm:$0xff]
    %v101 = vld [vmem:[#allocation6 + $0x110] sm:$0xff]
    %v102 = vld [vmem:[#allocation6 + $0x118] sm:$0xff]
    %v103 = vld [vmem:[#allocation6 + $0x120] sm:$0xff]
    %v104 = vld [vmem:[#allocation6 + $0x128] sm:$0xff]
    %v105 = vld [vmem:[#allocation6 + $0x130] sm:$0xff]
    %v106 = vld [vmem:[#allocation6 + $0x138] sm:$0xff]
    %v107 = vld [vmem:[#allocation6 + $0x140] sm:$0xff]
    %v108 = vld [vmem:[#allocation6 + $0x148] sm:$0xff]
    %v109 = vld [vmem:[#allocation6 + $0x150] sm:$0xff]
    %v110 = vld [vmem:[#allocation6 + $0x158] sm:$0xff]
    %v111 = vld [vmem:[#allocation6 + $0x160] sm:$0xff]
    %v112 = vld [vmem:[#allocation6 + $0x168] sm:$0xff]
    %v113 = vld [vmem:[#allocation6 + $0x170] sm:$0xff]
    %v114 = vld [vmem:[#allocation6 + $0x178] sm:$0xff]
    %v115 = vld [vmem:[#allocation6 + $0x180] sm:$0xff]
    %v116 = vld [vmem:[#allocation6 + $0x188] sm:$0xff]
    %v117 = vld [vmem:[#allocation6 + $0x190] sm:$0xff]
    %v118 = vld [vmem:[#allocation6 + $0x198] sm:$0xff]
    %v119 = vld [vmem:[#allocation6 + $0x1a0] sm:$0xff]
    %v120 = vld [vmem:[#allocation6 + $0x1a8] sm:$0xff]
    %v121 = vld [vmem:[#allocation6 + $0x1b0] sm:$0xff]
    %v122 = vld [vmem:[#allocation6 + $0x1b8] sm:$0xff]
    %v123 = vld [vmem:[#allocation6 + $0x1c0] sm:$0xff]
    %v124 = vld [vmem:[#allocation6 + $0x1c8] sm:$0xff]
    %v125 = vld [vmem:[#allocation6 + $0x1d0] sm:$0xff]
    %v126 = vld [vmem:[#allocation6 + $0x1d8] sm:$0xff]
    %v127 = vld [vmem:[#allocation6 + $0x1e0] sm:$0xff]
    %v128 = vld [vmem:[#allocation6 + $0x1e8] sm:$0xff]
    %v129 = vld [vmem:[#allocation6 + $0x1f0] sm:$0xff]
    %v130 = vld [vmem:[#allocation6 + $0x1f8] sm:$0xff]
    %v131 = vld [vmem:[%s3] sm:$0xf]
    %v133 = vlaneseq
    %v134 = vshrl.u32 %v133, 7
    %v135 = vsub.s32 0, %v134
    %v136 = vrot.slane %v131, %v135
    %v137 = vlaneseq
    %v138 = vshrl.u32 %v137, 7
    %v139 = vsub.s32 1, %v138
    %v140 = vrot.slane %v131, %v139
    %v141 = vlaneseq
    %v142 = vshrl.u32 %v141, 7
    %v143 = vsub.s32 2, %v142
    %v144 = vrot.slane %v131, %v143
    %v145 = vlaneseq
    %v146 = vshrl.u32 %v145, 7
    %v147 = vsub.s32 3, %v146
    %v148 = vrot.slane %v131, %v147
    %153 = vmatprep.subr.mxu0 %v68
    %154 = vmatpush1.msra.mxu0 %v67
    %155 = vmatprep.subr.mxu0 %v72
    %156 = vmatpush1.msra.mxu0 %v71
    %157 = vmatprep.subr.mxu0 %v76
    %158 = vmatpush1.msra.mxu0 %v75
    %159 = vmatprep.subr.mxu0 %v80
    %160 = vmatpush1.msra.mxu0 %v79
    %161 = vmatprep.subr.mxu0 %v84
    %162 = vmatpush1.msra.mxu0 %v83
    %163 = vmatprep.subr.mxu0 %v88
    %164 = vmatpush1.msra.mxu0 %v87
    %165 = vmatprep.subr.mxu0 %v92
    %166 = vmatpush1.msra.mxu0 %v91
    %167 = vmatprep.subr.mxu0 %v96
    %168 = vmatpush1.msra.mxu0 %v95
    %169 = vmatprep.subr.mxu0 %v100
    %170 = vmatpush1.msra.mxu0 %v99
    %171 = vmatprep.subr.mxu0 %v104
    %172 = vmatpush1.msra.mxu0 %v103
    %173 = vmatprep.subr.mxu0 %v108
    %174 = vmatpush1.msra.mxu0 %v107
    %175 = vmatprep.subr.mxu0 %v112
    %176 = vmatpush1.msra.mxu0 %v111
    %177 = vmatprep.subr.mxu0 %v116
    %178 = vmatpush1.msra.mxu0 %v115
    %179 = vmatprep.subr.mxu0 %v120
    %180 = vmatpush1.msra.mxu0 %v119
    %181 = vmatprep.subr.mxu0 %v124
    %182 = vmatpush1.msra.mxu0 %v123
    %183 = vmatprep.subr.mxu0 %v128
    %184 = vmatpush1.msra.mxu0 %v127
    %185 = vmatprep.subr.mxu0 0.0
    %186 = vmatpush1.msra.mxu0 0.0
    %187 = vmatprep.subr.mxu0 0.0
    %188 = vmatpush1.msra.mxu0 0.0
    %189 = vmatprep.subr.mxu0 0.0
    %190 = vmatpush1.msra.mxu0 0.0
    %191 = vmatprep.subr.mxu0 0.0
    %192 = vmatpush1.msra.mxu0 0.0
    %193 = vmatprep.subr.mxu0 0.0
    %194 = vmatpush1.msra.mxu0 0.0
    %195 = vmatprep.subr.mxu0 0.0
    %196 = vmatpush1.msra.mxu0 0.0
    %197 = vmatprep.subr.mxu0 0.0
    %198 = vmatpush1.msra.mxu0 0.0
    %199 = vmatprep.subr.mxu0 0.0
    %200 = vmatpush1.msra.mxu0 0.0
    %201 = vmatprep.subr.mxu0 0.0
    %202 = vmatpush1.msra.mxu0 0.0
    %203 = vmatprep.subr.mxu0 0.0
    %204 = vmatpush1.msra.mxu0 0.0
    %205 = vmatprep.subr.mxu0 0.0
    %206 = vmatpush1.msra.mxu0 0.0
    %207 = vmatprep.subr.mxu0 0.0
    %208 = vmatpush1.msra.mxu0 0.0
    %209 = vmatprep.subr.mxu0 0.0
    %210 = vmatpush1.msra.mxu0 0.0
    %211 = vmatprep.subr.mxu0 0.0
    %212 = vmatpush1.msra.mxu0 0.0
    %213 = vmatprep.subr.mxu0 0.0
    %214 = vmatpush1.msra.mxu0 0.0
    %215 = vmatprep.subr.mxu0 0.0
    %216 = vmatpush1.msra.mxu0 0.0
    %217 = vmatprep.mubr.f32.mxu0 0.0
    %218 = vmatmul.mubr.f32.gmra.mrb[0].mxu0 %v59
    %v219 = vpop.f32.mrb[0].mxu0
    %v220 = vadd.f32 %v136, %v219
    %v221 = vpop.f32.mrb[0].mxu0
    %v222 = vadd.f32 %v140, %v221
    %223 = vmatprep.mubr.f32.mxu0 0.0
    %224 = vmatmul.mubr.f32.gmra.mrb[0].mxu0 %v60
    %v225 = vpop.f32.mrb[0].mxu0
    %v226 = vadd.f32 %v136, %v225
    %v227 = vpop.f32.mrb[0].mxu0
    %v228 = vadd.f32 %v140, %v227
    %229 = vmatprep.mubr.f32.mxu0 0.0
    %230 = vmatmul.mubr.f32.gmra.mrb[0].mxu0 %v61
    %v231 = vpop.f32.mrb[0].mxu0
    %v232 = vadd.f32 %v136, %v231
    %v233 = vpop.f32.mrb[0].mxu0
    %v234 = vadd.f32 %v140, %v233
    %235 = vmatprep.mubr.f32.mxu0 0.0
    %236 = vmatmul.mubr.f32.gmra.mrb[0].mxu0 %v62
    %v237 = vpop.f32.mrb[0].mxu0
    %v238 = vadd.f32 %v136, %v237
    %v239 = vpop.f32.mrb[0].mxu0
    %v240 = vadd.f32 %v140, %v239
    %241 = vmatprep.mubr.f32.mxu0 0.0
    %242 = vmatmul.mubr.f32.gmra.mrb[0].mxu0 %v63
    %v243 = vpop.f32.mrb[0].mxu0
    %v244 = vadd.f32 %v136, %v243
    %v245 = vpop.f32.mrb[0].mxu0
    %v246 = vadd.f32 %v140, %v245
    %247 = vmatprep.mubr.f32.mxu0 0.0
    %248 = vmatmul.mubr.f32.gmra.mrb[0].mxu0 %v64
    %v249 = vpop.f32.mrb[0].mxu0
    %v250 = vadd.f32 %v136, %v249
    %v251 = vpop.f32.mrb[0].mxu0
    %v252 = vadd.f32 %v140, %v251
    %253 = vmatprep.mubr.f32.mxu0 0.0
    %254 = vmatmul.mubr.f32.gmra.mrb[0].mxu0 %v65
    %v255 = vpop.f32.mrb[0].mxu0
    %v256 = vadd.f32 %v136, %v255
    %v257 = vpop.f32.mrb[0].mxu0
    %v258 = vadd.f32 %v140, %v257
    %259 = vmatprep.mubr.f32.mxu0 0.0
    %260 = vmatmul.mubr.f32.gmra.mrb[0].mxu0 %v66
    %v261 = vpop.f32.mrb[0].mxu0
    %v262 = vadd.f32 %v136, %v261
    %v263 = vpop.f32.mrb[0].mxu0
    %v264 = vadd.f32 %v140, %v263
    %265 = vdwg.mxu0
    %266 = vmatprep.subr.mxu0 %v70
    %267 = vmatpush1.msra.mxu0 %v69
    %268 = vmatprep.subr.mxu0 %v74
    %269 = vmatpush1.msra.mxu0 %v73
    %270 = vmatprep.subr.mxu0 %v78
    %271 = vmatpush1.msra.mxu0 %v77
    %272 = vmatprep.subr.mxu0 %v82
    %273 = vmatpush1.msra.mxu0 %v81
    %274 = vmatprep.subr.mxu0 %v86
    %275 = vmatpush1.msra.mxu0 %v85
    %276 = vmatprep.subr.mxu0 %v90
    %277 = vmatpush1.msra.mxu0 %v89
    %278 = vmatprep.subr.mxu0 %v94
    %279 = vmatpush1.msra.mxu0 %v93
    %280 = vmatprep.subr.mxu0 %v98
    %281 = vmatpush1.msra.mxu0 %v97
    %282 = vmatprep.subr.mxu0 %v102
    %283 = vmatpush1.msra.mxu0 %v101
    %284 = vmatprep.subr.mxu0 %v106
    %285 = vmatpush1.msra.mxu0 %v105
    %286 = vmatprep.subr.mxu0 %v110
    %287 = vmatpush1.msra.mxu0 %v109
    %288 = vmatprep.subr.mxu0 %v114
    %289 = vmatpush1.msra.mxu0 %v113
    %290 = vmatprep.subr.mxu0 %v118
    %291 = vmatpush1.msra.mxu0 %v117
    %292 = vmatprep.subr.mxu0 %v122
    %293 = vmatpush1.msra.mxu0 %v121
    %294 = vmatprep.subr.mxu0 %v126
    %295 = vmatpush1.msra.mxu0 %v125
    %296 = vmatprep.subr.mxu0 %v130
    %297 = vmatpush1.msra.mxu0 %v129
    %298 = vmatprep.subr.mxu0 0.0
    %299 = vmatpush1.msra.mxu0 0.0
    %300 = vmatprep.subr.mxu0 0.0
    %301 = vmatpush1.msra.mxu0 0.0
    %302 = vmatprep.subr.mxu0 0.0
    %303 = vmatpush1.msra.mxu0 0.0
    %304 = vmatprep.subr.mxu0 0.0
    %305 = vmatpush1.msra.mxu0 0.0
    %306 = vmatprep.subr.mxu0 0.0
    %307 = vmatpush1.msra.mxu0 0.0
    %308 = vmatprep.subr.mxu0 0.0
    %309 = vmatpush1.msra.mxu0 0.0
    %310 = vmatprep.subr.mxu0 0.0
    %311 = vmatpush1.msra.mxu0 0.0
    %312 = vmatprep.subr.mxu0 0.0
    %313 = vmatpush1.msra.mxu0 0.0
    %314 = vmatprep.subr.mxu0 0.0
    %315 = vmatpush1.msra.mxu0 0.0
    %316 = vmatprep.subr.mxu0 0.0
    %317 = vmatpush1.msra.mxu0 0.0
    %318 = vmatprep.subr.mxu0 0.0
    %319 = vmatpush1.msra.mxu0 0.0
    %320 = vmatprep.subr.mxu0 0.0
    %321 = vmatpush1.msra.mxu0 0.0
    %322 = vmatprep.subr.mxu0 0.0
    %323 = vmatpush1.msra.mxu0 0.0
    %324 = vmatprep.subr.mxu0 0.0
    %325 = vmatpush1.msra.mxu0 0.0
    %326 = vmatprep.subr.mxu0 0.0
    %327 = vmatpush1.msra.mxu0 0.0
    %328 = vmatprep.subr.mxu0 0.0
    %329 = vmatpush1.msra.mxu0 0.0
    %330 = vmatprep.mubr.f32.mxu0 0.0
    %331 = vmatmul.mubr.f32.gmra.mrb[0].mxu0 %v59
    %v332 = vpop.f32.mrb[0].mxu0
    %v333 = vadd.f32 %v144, %v332
    %v334 = vpop.f32.mrb[0].mxu0
    %v335 = vadd.f32 %v148, %v334
    %336 = vmatprep.mubr.f32.mxu0 0.0
    %337 = vmatmul.mubr.f32.gmra.mrb[0].mxu0 %v60
    %v338 = vpop.f32.mrb[0].mxu0
    %v339 = vadd.f32 %v144, %v338
    %v340 = vpop.f32.mrb[0].mxu0
    %v341 = vadd.f32 %v148, %v340
    %342 = vmatprep.mubr.f32.mxu0 0.0
    %343 = vmatmul.mubr.f32.gmra.mrb[0].mxu0 %v61
    %v344 = vpop.f32.mrb[0].mxu0
    %v345 = vadd.f32 %v144, %v344
    %v346 = vpop.f32.mrb[0].mxu0
    %v347 = vadd.f32 %v148, %v346
    %348 = vmatprep.mubr.f32.mxu0 0.0
    %349 = vmatmul.mubr.f32.gmra.mrb[0].mxu0 %v62
    %v350 = vpop.f32.mrb[0].mxu0
    %v351 = vadd.f32 %v144, %v350
    %v352 = vpop.f32.mrb[0].mxu0
    %v353 = vadd.f32 %v148, %v352
    %354 = vmatprep.mubr.f32.mxu0 0.0
    %355 = vmatmul.mubr.f32.gmra.mrb[0].mxu0 %v63
    %v356 = vpop.f32.mrb[0].mxu0
    %v357 = vadd.f32 %v144, %v356
    %v358 = vpop.f32.mrb[0].mxu0
    %v359 = vadd.f32 %v148, %v358
    %360 = vmatprep.mubr.f32.mxu0 0.0
    %361 = vmatmul.mubr.f32.gmra.mrb[0].mxu0 %v64
    %v362 = vpop.f32.mrb[0].mxu0
    %v363 = vadd.f32 %v144, %v362
    %v364 = vpop.f32.mrb[0].mxu0
    %v365 = vadd.f32 %v148, %v364
    %366 = vmatprep.mubr.f32.mxu0 0.0
    %367 = vmatmul.mubr.f32.gmra.mrb[0].mxu0 %v65
    %v368 = vpop.f32.mrb[0].mxu0
    %v369 = vadd.f32 %v144, %v368
    %v370 = vpop.f32.mrb[0].mxu0
    %v371 = vadd.f32 %v148, %v370
    %372 = vmatprep.mubr.f32.mxu0 0.0
    %373 = vmatmul.mubr.f32.gmra.mrb[0].mxu0 %v66
    %v374 = vpop.f32.mrb[0].mxu0
    %v375 = vadd.f32 %v144, %v374
    %v376 = vpop.f32.mrb[0].mxu0
    %v377 = vadd.f32 %v148, %v376
    %378 = vdwg.mxu0
    %379 = vst [vmem:[#allocation2] sm:$0xff] %v220
    %380 = vst [vmem:[#allocation2 + $0x8] sm:$0xff] %v222
    %381 = vst [vmem:[#allocation2 + $0x10] sm:$0xff] %v333
    %382 = vst [vmem:[#allocation2 + $0x18] sm:$0xff] %v335
    %383 = vst [vmem:[#allocation2 + $0x20] sm:$0xff] %v226
    %384 = vst [vmem:[#allocation2 + $0x28] sm:$0xff] %v228
    %385 = vst [vmem:[#allocation2 + $0x30] sm:$0xff] %v339
    %386 = vst [vmem:[#allocation2 + $0x38] sm:$0xff] %v341
    %387 = vst [vmem:[#allocation2 + $0x40] sm:$0xff] %v232
    %388 = vst [vmem:[#allocation2 + $0x48] sm:$0xff] %v234
    %389 = vst [vmem:[#allocation2 + $0x50] sm:$0xff] %v345
    %390 = vst [vmem:[#allocation2 + $0x58] sm:$0xff] %v347
    %391 = vst [vmem:[#allocation2 + $0x60] sm:$0xff] %v238
    %392 = vst [vmem:[#allocation2 + $0x68] sm:$0xff] %v240
    %393 = vst [vmem:[#allocation2 + $0x70] sm:$0xff] %v351
    %394 = vst [vmem:[#allocation2 + $0x78] sm:$0xff] %v353
    %395 = vst [vmem:[#allocation2 + $0x80] sm:$0xff] %v244
    %396 = vst [vmem:[#allocation2 + $0x88] sm:$0xff] %v246
    %397 = vst [vmem:[#allocation2 + $0x90] sm:$0xff] %v357
    %398 = vst [vmem:[#allocation2 + $0x98] sm:$0xff] %v359
    %399 = vst [vmem:[#allocation2 + $0xa0] sm:$0xff] %v250
    %400 = vst [vmem:[#allocation2 + $0xa8] sm:$0xff] %v252
    %401 = vst [vmem:[#allocation2 + $0xb0] sm:$0xff] %v363
    %402 = vst [vmem:[#allocation2 + $0xb8] sm:$0xff] %v365
    %403 = vst [vmem:[#allocation2 + $0xc0] sm:$0xff] %v256
    %404 = vst [vmem:[#allocation2 + $0xc8] sm:$0xff] %v258
    %405 = vst [vmem:[#allocation2 + $0xd0] sm:$0xff] %v369
    %406 = vst [vmem:[#allocation2 + $0xd8] sm:$0xff] %v371
    %407 = vst [vmem:[#allocation2 + $0xe0] sm:$0xff] %v262
    %408 = vst [vmem:[#allocation2 + $0xe8] sm:$0xff] %v264
    %409 = vst [vmem:[#allocation2 + $0xf0] sm:$0xff] %v375
    %410 = vst [vmem:[#allocation2 + $0xf8] sm:$0xff] %v377
    %v411 = vld [vmem:[#allocation2] sm:$0xff]
    %v412 = vld [vmem:[#allocation2 + $0x8] sm:$0xff]
    %v413 = vld [vmem:[#allocation2 + $0x10] sm:$0xff]
    %v414 = vld [vmem:[#allocation2 + $0x18] sm:$0xff]
    %v415 = vld [vmem:[#allocation8] sm:$0xff]
    %v416 = vld [vmem:[#allocation8 + $0x8] sm:$0xff]
    %v417 = vld [vmem:[#allocation8 + $0x10] sm:$0xff]
    %v418 = vld [vmem:[#allocation8 + $0x18] sm:$0xff]
    %v419 = vld [vmem:[#allocation8 + $0x20] sm:$0xff]
    %v420 = vld [vmem:[#allocation8 + $0x28] sm:$0xff]
    %v421 = vld [vmem:[#allocation8 + $0x30] sm:$0xff]
    %v422 = vld [vmem:[#allocation8 + $0x38] sm:$0xff]
    %v423 = vld [vmem:[#allocation8 + $0x40] sm:$0xff]
    %v424 = vld [vmem:[#allocation8 + $0x48] sm:$0xff]
    %v425 = vld [vmem:[#allocation8 + $0x50] sm:$0xff]
    %v426 = vld [vmem:[#allocation8 + $0x58] sm:$0xff]
    %v427 = vld [vmem:[#allocation8 + $0x60] sm:$0xff]
    %v428 = vld [vmem:[#allocation8 + $0x68] sm:$0xff]
    %v429 = vld [vmem:[#allocation8 + $0x70] sm:$0xff]
    %v430 = vld [vmem:[#allocation8 + $0x78] sm:$0xff]
    %v431 = vld [vmem:[#allocation8 + $0x80] sm:$0xff]
    %v432 = vld [vmem:[#allocation8 + $0x88] sm:$0xff]
    %v433 = vld [vmem:[#allocation8 + $0x90] sm:$0xff]
    %v434 = vld [vmem:[#allocation8 + $0x98] sm:$0xff]
    %v435 = vld [vmem:[#allocation8 + $0xa0] sm:$0xff]
    %v436 = vld [vmem:[#allocation8 + $0xa8] sm:$0xff]
    %v437 = vld [vmem:[#allocation8 + $0xb0] sm:$0xff]
    %v438 = vld [vmem:[#allocation8 + $0xb8] sm:$0xff]
    %v439 = vld [vmem:[#allocation8 + $0xc0] sm:$0xff]
    %v440 = vld [vmem:[#allocation8 + $0xc8] sm:$0xff]
    %v441 = vld [vmem:[#allocation8 + $0xd0] sm:$0xff]
    %v442 = vld [vmem:[#allocation8 + $0xd8] sm:$0xff]
    %v443 = vld [vmem:[#allocation8 + $0xe0] sm:$0xff]
    %v444 = vld [vmem:[#allocation8 + $0xe8] sm:$0xff]
    %v445 = vld [vmem:[#allocation8 + $0xf0] sm:$0xff]
    %v446 = vld [vmem:[#allocation8 + $0xf8] sm:$0xff]
    %v447 = vld [vmem:[#allocation8 + $0x100] sm:$0xff]
    %v448 = vld [vmem:[#allocation8 + $0x108] sm:$0xff]
    %v449 = vld [vmem:[#allocation8 + $0x110] sm:$0xff]
    %v450 = vld [vmem:[#allocation8 + $0x118] sm:$0xff]
    %v451 = vld [vmem:[#allocation8 + $0x120] sm:$0xff]
    %v452 = vld [vmem:[#allocation8 + $0x128] sm:$0xff]
    %v453 = vld [vmem:[#allocation8 + $0x130] sm:$0xff]
    %v454 = vld [vmem:[#allocation8 + $0x138] sm:$0xff]
    %v455 = vld [vmem:[#allocation8 + $0x140] sm:$0xff]
    %v456 = vld [vmem:[#allocation8 + $0x148] sm:$0xff]
    %v457 = vld [vmem:[#allocation8 + $0x150] sm:$0xff]
    %v458 = vld [vmem:[#allocation8 + $0x158] sm:$0xff]
    %v459 = vld [vmem:[#allocation8 + $0x160] sm:$0xff]
    %v460 = vld [vmem:[#allocation8 + $0x168] sm:$0xff]
    %v461 = vld [vmem:[#allocation8 + $0x170] sm:$0xff]
    %v462 = vld [vmem:[#allocation8 + $0x178] sm:$0xff]
    %v463 = vld [vmem:[#allocation8 + $0x180] sm:$0xff]
    %v464 = vld [vmem:[#allocation8 + $0x188] sm:$0xff]
    %v465 = vld [vmem:[#allocation8 + $0x190] sm:$0xff]
    %v466 = vld [vmem:[#allocation8 + $0x198] sm:$0xff]
    %v467 = vld [vmem:[#allocation8 + $0x1a0] sm:$0xff]
    %v468 = vld [vmem:[#allocation8 + $0x1a8] sm:$0xff]
    %v469 = vld [vmem:[#allocation8 + $0x1b0] sm:$0xff]
    %v470 = vld [vmem:[#allocation8 + $0x1b8] sm:$0xff]
    %v471 = vld [vmem:[#allocation8 + $0x1c0] sm:$0xff]
    %v472 = vld [vmem:[#allocation8 + $0x1c8] sm:$0xff]
    %v473 = vld [vmem:[#allocation8 + $0x1d0] sm:$0xff]
    %v474 = vld [vmem:[#allocation8 + $0x1d8] sm:$0xff]
    %v475 = vld [vmem:[#allocation8 + $0x1e0] sm:$0xff]
    %v476 = vld [vmem:[#allocation8 + $0x1e8] sm:$0xff]
    %v477 = vld [vmem:[#allocation8 + $0x1f0] sm:$0xff]
    %v478 = vld [vmem:[#allocation8 + $0x1f8] sm:$0xff]
    %479 = vmatprep.subr.mxu0 %v416
    %480 = vmatpush1.msra.mxu0 %v415
    %481 = vmatprep.subr.mxu0 %v420
    %482 = vmatpush1.msra.mxu0 %v419
    %483 = vmatprep.subr.mxu0 %v424
    %484 = vmatpush1.msra.mxu0 %v423
    %485 = vmatprep.subr.mxu0 %v428
    %486 = vmatpush1.msra.mxu0 %v427
    %487 = vmatprep.subr.mxu0 %v432
    %488 = vmatpush1.msra.mxu0 %v431
    %489 = vmatprep.subr.mxu0 %v436
    %490 = vmatpush1.msra.mxu0 %v435
    %491 = vmatprep.subr.mxu0 %v440
    %492 = vmatpush1.msra.mxu0 %v439
    %493 = vmatprep.subr.mxu0 %v444
    %494 = vmatpush1.msra.mxu0 %v443
    %495 = vmatprep.subr.mxu0 %v448
    %496 = vmatpush1.msra.mxu0 %v447
    %497 = vmatprep.subr.mxu0 %v452
    %498 = vmatpush1.msra.mxu0 %v451
    %499 = vmatprep.subr.mxu0 %v456
    %500 = vmatpush1.msra.mxu0 %v455
    %501 = vmatprep.subr.mxu0 %v460
    %502 = vmatpush1.msra.mxu0 %v459
    %503 = vmatprep.subr.mxu0 %v464
    %504 = vmatpush1.msra.mxu0 %v463
    %505 = vmatprep.subr.mxu0 %v468
    %506 = vmatpush1.msra.mxu0 %v467
    %507 = vmatprep.subr.mxu0 %v472
    %508 = vmatpush1.msra.mxu0 %v471
    %509 = vmatprep.subr.mxu0 %v476
    %510 = vmatpush1.msra.mxu0 %v475
    %511 = vmatprep.subr.mxu0 0.0
    %512 = vmatpush1.msra.mxu0 0.0
    %513 = vmatprep.subr.mxu0 0.0
    %514 = vmatpush1.msra.mxu0 0.0
    %515 = vmatprep.subr.mxu0 0.0
    %516 = vmatpush1.msra.mxu0 0.0
    %517 = vmatprep.subr.mxu0 0.0
    %518 = vmatpush1.msra.mxu0 0.0
    %519 = vmatprep.subr.mxu0 0.0
    %520 = vmatpush1.msra.mxu0 0.0
    %521 = vmatprep.subr.mxu0 0.0
    %522 = vmatpush1.msra.mxu0 0.0
    %523 = vmatprep.subr.mxu0 0.0
    %524 = vmatpush1.msra.mxu0 0.0
    %525 = vmatprep.subr.mxu0 0.0
    %526 = vmatpush1.msra.mxu0 0.0
    %527 = vmatprep.subr.mxu0 0.0
    %528 = vmatpush1.msra.mxu0 0.0
    %529 = vmatprep.subr.mxu0 0.0
    %530 = vmatpush1.msra.mxu0 0.0
    %531 = vmatprep.subr.mxu0 0.0
    %532 = vmatpush1.msra.mxu0 0.0
    %533 = vmatprep.subr.mxu0 0.0
    %534 = vmatpush1.msra.mxu0 0.0
    %535 = vmatprep.subr.mxu0 0.0
    %536 = vmatpush1.msra.mxu0 0.0
    %537 = vmatprep.subr.mxu0 0.0
    %538 = vmatpush1.msra.mxu0 0.0
    %539 = vmatprep.subr.mxu0 0.0
    %540 = vmatpush1.msra.mxu0 0.0
    %541 = vmatprep.subr.mxu0 0.0
    %542 = vmatpush1.msra.mxu0 0.0
    %543 = vmatprep.mubr.f32.mxu0 0.0
    %544 = vmatmul.mubr.f32.gmra.mrb[0].mxu0 0.0
    %v545 = vpop.f32.mrb[0].mxu0
    %v546 = vadd.f32 0.0, %v545
    %v547 = vpop.f32.mrb[0].mxu0
    %v548 = vadd.f32 0.0, %v547
    %549 = vdwg.mxu0
    %550 = vmatprep.subr.mxu0 %v418
    %551 = vmatpush1.msra.mxu0 %v417
    %552 = vmatprep.subr.mxu0 %v422
    %553 = vmatpush1.msra.mxu0 %v421
    %554 = vmatprep.subr.mxu0 %v426
    %555 = vmatpush1.msra.mxu0 %v425
    %556 = vmatprep.subr.mxu0 %v430
    %557 = vmatpush1.msra.mxu0 %v429
    %558 = vmatprep.subr.mxu0 %v434
    %559 = vmatpush1.msra.mxu0 %v433
    %560 = vmatprep.subr.mxu0 %v438
    %561 = vmatpush1.msra.mxu0 %v437
    %562 = vmatprep.subr.mxu0 %v442
    %563 = vmatpush1.msra.mxu0 %v441
    %564 = vmatprep.subr.mxu0 %v446
    %565 = vmatpush1.msra.mxu0 %v445
    %566 = vmatprep.subr.mxu0 %v450
    %567 = vmatpush1.msra.mxu0 %v449
    %568 = vmatprep.subr.mxu0 %v454
    %569 = vmatpush1.msra.mxu0 %v453
    %570 = vmatprep.subr.mxu0 %v458
    %571 = vmatpush1.msra.mxu0 %v457
    %572 = vmatprep.subr.mxu0 %v462
    %573 = vmatpush1.msra.mxu0 %v461
    %574 = vmatprep.subr.mxu0 %v466
    %575 = vmatpush1.msra.mxu0 %v465
    %576 = vmatprep.subr.mxu0 %v470
    %577 = vmatpush1.msra.mxu0 %v469
    %578 = vmatprep.subr.mxu0 %v474
    %579 = vmatpush1.msra.mxu0 %v473
    %580 = vmatprep.subr.mxu0 %v478
    %581 = vmatpush1.msra.mxu0 %v477
    %582 = vmatprep.subr.mxu0 0.0
    %583 = vmatpush1.msra.mxu0 0.0
    %584 = vmatprep.subr.mxu0 0.0
    %585 = vmatpush1.msra.mxu0 0.0
    %586 = vmatprep.subr.mxu0 0.0
    %587 = vmatpush1.msra.mxu0 0.0
    %588 = vmatprep.subr.mxu0 0.0
    %589 = vmatpush1.msra.mxu0 0.0
    %590 = vmatprep.subr.mxu0 0.0
    %591 = vmatpush1.msra.mxu0 0.0
    %592 = vmatprep.subr.mxu0 0.0
    %593 = vmatpush1.msra.mxu0 0.0
    %594 = vmatprep.subr.mxu0 0.0
    %595 = vmatpush1.msra.mxu0 0.0
    %596 = vmatprep.subr.mxu0 0.0
    %597 = vmatpush1.msra.mxu0 0.0
    %598 = vmatprep.subr.mxu0 0.0
    %599 = vmatpush1.msra.mxu0 0.0
    %600 = vmatprep.subr.mxu0 0.0
    %601 = vmatpush1.msra.mxu0 0.0
    %602 = vmatprep.subr.mxu0 0.0
    %603 = vmatpush1.msra.mxu0 0.0
    %604 = vmatprep.subr.mxu0 0.0
    %605 = vmatpush1.msra.mxu0 0.0
    %606 = vmatprep.subr.mxu0 0.0
    %607 = vmatpush1.msra.mxu0 0.0
    %608 = vmatprep.subr.mxu0 0.0
    %609 = vmatpush1.msra.mxu0 0.0
    %610 = vmatprep.subr.mxu0 0.0
    %611 = vmatpush1.msra.mxu0 0.0
    %612 = vmatprep.subr.mxu0 0.0
    %613 = vmatpush1.msra.mxu0 0.0
    %614 = vmatprep.mubr.f32.mxu0 0.0
    %615 = vmatmul.mubr.f32.gmra.mrb[0].mxu0 0.0
    %v616 = vpop.f32.mrb[0].mxu0
    %v617 = vadd.f32 0.0, %v616
    %v618 = vpop.f32.mrb[0].mxu0
    %v619 = vadd.f32 0.0, %v618
    %620 = vdwg.mxu0
    %v621 = vadd.f32 %v411, %v546
    %v622 = vadd.f32 %v412, %v548
    %v623 = vadd.f32 %v413, %v617
    %v624 = vadd.f32 %v414, %v619
    %v625 = vxor.u32 %v621, 2147483648
    %v626 = vmul.f32 %v625, 1.442695
    %v627 = vpow.pop %v626
    %v628 = vadd.f32 %v627, 1.0
    %v629 = vrcp.pop %v628
    %v630 = vmul.f32 1.0, %v629
    %v631 = vxor.u32 %v622, 2147483648
    %v632 = vmul.f32 %v631, 1.442695
    %v633 = vpow.pop %v632
    %v634 = vadd.f32 %v633, 1.0
    %v635 = vrcp.pop %v634
    %v636 = vmul.f32 1.0, %v635
    %v637 = vtanh.pop %v623
    %v638 = vxor.u32 %v624, 2147483648
    %v639 = vmul.f32 %v638, 1.442695
    %v640 = vpow.pop %v639
    %v641 = vadd.f32 %v640, 1.0
    %v642 = vrcp.pop %v641
    %v643 = vmul.f32 1.0, %v642
    %v644 = vmul.f32 %v636, 0.0
    %v645 = vmul.f32 %v630, %v637
    %v646 = vadd.f32 %v644, %v645
    %v647 = vtanh.pop %v646
    %v648 = vmul.f32 %v643, %v647
    %v649 = vld [vmem:[#allocation2 + $0x20] sm:$0xff]
    %v650 = vld [vmem:[#allocation2 + $0x28] sm:$0xff]
    %v651 = vld [vmem:[#allocation2 + $0x30] sm:$0xff]
    %v652 = vld [vmem:[#allocation2 + $0x38] sm:$0xff]
    %653 = vmatprep.subr.mxu0 %v416
    %654 = vmatpush1.msra.mxu0 %v415
    %655 = vmatprep.subr.mxu0 %v420
    %656 = vmatpush1.msra.mxu0 %v419
    %657 = vmatprep.subr.mxu0 %v424
    %658 = vmatpush1.msra.mxu0 %v423
    %659 = vmatprep.subr.mxu0 %v428
    %660 = vmatpush1.msra.mxu0 %v427
    %661 = vmatprep.subr.mxu0 %v432
    %662 = vmatpush1.msra.mxu0 %v431
    %663 = vmatprep.subr.mxu0 %v436
    %664 = vmatpush1.msra.mxu0 %v435
    %665 = vmatprep.subr.mxu0 %v440
    %666 = vmatpush1.msra.mxu0 %v439
    %667 = vmatprep.subr.mxu0 %v444
    %668 = vmatpush1.msra.mxu0 %v443
    %669 = vmatprep.subr.mxu0 %v448
    %670 = vmatpush1.msra.mxu0 %v447
    %671 = vmatprep.subr.mxu0 %v452
    %672 = vmatpush1.msra.mxu0 %v451
    %673 = vmatprep.subr.mxu0 %v456
    %674 = vmatpush1.msra.mxu0 %v455
    %675 = vmatprep.subr.mxu0 %v460
    %676 = vmatpush1.msra.mxu0 %v459
    %677 = vmatprep.subr.mxu0 %v464
    %678 = vmatpush1.msra.mxu0 %v463
    %679 = vmatprep.subr.mxu0 %v468
    %680 = vmatpush1.msra.mxu0 %v467
    %681 = vmatprep.subr.mxu0 %v472
    %682 = vmatpush1.msra.mxu0 %v471
    %683 = vmatprep.subr.mxu0 %v476
    %684 = vmatpush1.msra.mxu0 %v475
    %685 = vmatprep.subr.mxu0 0.0
    %686 = vmatpush1.msra.mxu0 0.0
    %687 = vmatprep.subr.mxu0 0.0
    %688 = vmatpush1.msra.mxu0 0.0
    %689 = vmatprep.subr.mxu0 0.0
    %690 = vmatpush1.msra.mxu0 0.0
    %691 = vmatprep.subr.mxu0 0.0
    %692 = vmatpush1.msra.mxu0 0.0
    %693 = vmatprep.subr.mxu0 0.0
    %694 = vmatpush1.msra.mxu0 0.0
    %695 = vmatprep.subr.mxu0 0.0
    %696 = vmatpush1.msra.mxu0 0.0
    %697 = vmatprep.subr.mxu0 0.0
    %698 = vmatpush1.msra.mxu0 0.0
    %699 = vmatprep.subr.mxu0 0.0
    %700 = vmatpush1.msra.mxu0 0.0
    %701 = vmatprep.subr.mxu0 0.0
    %702 = vmatpush1.msra.mxu0 0.0
    %703 = vmatprep.subr.mxu0 0.0
    %704 = vmatpush1.msra.mxu0 0.0
    %705 = vmatprep.subr.mxu0 0.0
    %706 = vmatpush1.msra.mxu0 0.0
    %707 = vmatprep.subr.mxu0 0.0
    %708 = vmatpush1.msra.mxu0 0.0
    %709 = vmatprep.subr.mxu0 0.0
    %710 = vmatpush1.msra.mxu0 0.0
    %711 = vmatprep.subr.mxu0 0.0
    %712 = vmatpush1.msra.mxu0 0.0
    %713 = vmatprep.subr.mxu0 0.0
    %714 = vmatpush1.msra.mxu0 0.0
    %715 = vmatprep.subr.mxu0 0.0
    %716 = vmatpush1.msra.mxu0 0.0
    %717 = vmatprep.mubr.f32.mxu0 0.0
    %718 = vmatmul.mubr.f32.gmra.mrb[0].mxu0 %v648
    %v719 = vpop.f32.mrb[0].mxu0
    %v720 = vadd.f32 0.0, %v719
    %v721 = vpop.f32.mrb[0].mxu0
    %v722 = vadd.f32 0.0, %v721
    %723 = vdwg.mxu0
    %724 = vmatprep.subr.mxu0 %v418
    %725 = vmatpush1.msra.mxu0 %v417
    %726 = vmatprep.subr.mxu0 %v422
    %727 = vmatpush1.msra.mxu0 %v421
    %728 = vmatprep.subr.mxu0 %v426
    %729 = vmatpush1.msra.mxu0 %v425
    %730 = vmatprep.subr.mxu0 %v430
    %731 = vmatpush1.msra.mxu0 %v429
    %732 = vmatprep.subr.mxu0 %v434
    %733 = vmatpush1.msra.mxu0 %v433
    %734 = vmatprep.subr.mxu0 %v438
    %735 = vmatpush1.msra.mxu0 %v437
    %736 = vmatprep.subr.mxu0 %v442
    %737 = vmatpush1.msra.mxu0 %v441
    %738 = vmatprep.subr.mxu0 %v446
    %739 = vmatpush1.msra.mxu0 %v445
    %740 = vmatprep.subr.mxu0 %v450
    %741 = vmatpush1.msra.mxu0 %v449
    %742 = vmatprep.subr.mxu0 %v454
    %743 = vmatpush1.msra.mxu0 %v453
    %744 = vmatprep.subr.mxu0 %v458
    %745 = vmatpush1.msra.mxu0 %v457
    %746 = vmatprep.subr.mxu0 %v462
    %747 = vmatpush1.msra.mxu0 %v461
    %748 = vmatprep.subr.mxu0 %v466
    %749 = vmatpush1.msra.mxu0 %v465
    %750 = vmatprep.subr.mxu0 %v470
    %751 = vmatpush1.msra.mxu0 %v469
    %752 = vmatprep.subr.mxu0 %v474
    %753 = vmatpush1.msra.mxu0 %v473
    %754 = vmatprep.subr.mxu0 %v478
    %755 = vmatpush1.msra.mxu0 %v477
    %756 = vmatprep.subr.mxu0 0.0
    %757 = vmatpush1.msra.mxu0 0.0
    %758 = vmatprep.subr.mxu0 0.0
    %759 = vmatpush1.msra.mxu0 0.0
    %760 = vmatprep.subr.mxu0 0.0
    %761 = vmatpush1.msra.mxu0 0.0
    %762 = vmatprep.subr.mxu0 0.0
    %763 = vmatpush1.msra.mxu0 0.0
    %764 = vmatprep.subr.mxu0 0.0
    %765 = vmatpush1.msra.mxu0 0.0
    %766 = vmatprep.subr.mxu0 0.0
    %767 = vmatpush1.msra.mxu0 0.0
    %768 = vmatprep.subr.mxu0 0.0
    %769 = vmatpush1.msra.mxu0 0.0
    %770 = vmatprep.subr.mxu0 0.0
    %771 = vmatpush1.msra.mxu0 0.0
    %772 = vmatprep.subr.mxu0 0.0
    %773 = vmatpush1.msra.mxu0 0.0
    %774 = vmatprep.subr.mxu0 0.0
    %775 = vmatpush1.msra.mxu0 0.0
    %776 = vmatprep.subr.mxu0 0.0
    %777 = vmatpush1.msra.mxu0 0.0
    %778 = vmatprep.subr.mxu0 0.0
    %779 = vmatpush1.msra.mxu0 0.0
    %780 = vmatprep.subr.mxu0 0.0
    %781 = vmatpush1.msra.mxu0 0.0
    %782 = vmatprep.subr.mxu0 0.0
    %783 = vmatpush1.msra.mxu0 0.0
    %784 = vmatprep.subr.mxu0 0.0
    %785 = vmatpush1.msra.mxu0 0.0
    %786 = vmatprep.subr.mxu0 0.0
    %787 = vmatpush1.msra.mxu0 0.0
    %788 = vmatprep.mubr.f32.mxu0 0.0
    %789 = vmatmul.mubr.f32.gmra.mrb[0].mxu0 %v648
    %v790 = vpop.f32.mrb[0].mxu0
    %v791 = vadd.f32 0.0, %v790
    %v792 = vpop.f32.mrb[0].mxu0
    %v793 = vadd.f32 0.0, %v792
    %794 = vdwg.mxu0
    %v795 = vadd.f32 %v649, %v720
    %v796 = vadd.f32 %v650, %v722
    %v797 = vadd.f32 %v651, %v791
    %v798 = vadd.f32 %v652, %v793
    %v799 = vxor.u32 %v795, 2147483648
    %v800 = vmul.f32 %v799, 1.442695
    %v801 = vpow.pop %v800
    %v802 = vadd.f32 %v801, 1.0
    %v803 = vrcp.pop %v802
    %v804 = vmul.f32 1.0, %v803
    %v805 = vxor.u32 %v796, 2147483648
    %v806 = vmul.f32 %v805, 1.442695
    %v807 = vpow.pop %v806
    %v808 = vadd.f32 %v807, 1.0
    %v809 = vrcp.pop %v808
    %v810 = vmul.f32 1.0, %v809
    %v811 = vtanh.pop %v797
    %v812 = vxor.u32 %v798, 2147483648
    %v813 = vmul.f32 %v812, 1.442695
    %v814 = vpow.pop %v813
    %v815 = vadd.f32 %v814, 1.0
    %v816 = vrcp.pop %v815
    %v817 = vmul.f32 1.0, %v816
    %v818 = vmul.f32 %v810, %v646
    %v819 = vmul.f32 %v804, %v811
    %v820 = vadd.f32 %v818, %v819
    %v821 = vtanh.pop %v820
    %v822 = vmul.f32 %v817, %v821
    %v823 = vld [vmem:[#allocation2 + $0x40] sm:$0xff]
    %v824 = vld [vmem:[#allocation2 + $0x48] sm:$0xff]
    %v825 = vld [vmem:[#allocation2 + $0x50] sm:$0xff]
    %v826 = vld [vmem:[#allocation2 + $0x58] sm:$0xff]
    %827 = vmatprep.subr.mxu0 %v416
    %828 = vmatpush1.msra.mxu0 %v415
    %829 = vmatprep.subr.mxu0 %v420
    %830 = vmatpush1.msra.mxu0 %v419
    %831 = vmatprep.subr.mxu0 %v424
    %832 = vmatpush1.msra.mxu0 %v423
    %833 = vmatprep.subr.mxu0 %v428
    %834 = vmatpush1.msra.mxu0 %v427
    %835 = vmatprep.subr.mxu0 %v432
    %836 = vmatpush1.msra.mxu0 %v431
    %837 = vmatprep.subr.mxu0 %v436
    %838 = vmatpush1.msra.mxu0 %v435
    %839 = vmatprep.subr.mxu0 %v440
    %840 = vmatpush1.msra.mxu0 %v439
    %841 = vmatprep.subr.mxu0 %v444
    %842 = vmatpush1.msra.mxu0 %v443
    %843 = vmatprep.subr.mxu0 %v448
    %844 = vmatpush1.msra.mxu0 %v447
    %845 = vmatprep.subr.mxu0 %v452
    %846 = vmatpush1.msra.mxu0 %v451
    %847 = vmatprep.subr.mxu0 %v456
    %848 = vmatpush1.msra.mxu0 %v455
    %849 = vmatprep.subr.mxu0 %v460
    %850 = vmatpush1.msra.mxu0 %v459
    %851 = vmatprep.subr.mxu0 %v464
    %852 = vmatpush1.msra.mxu0 %v463
    %853 = vmatprep.subr.mxu0 %v468
    %854 = vmatpush1.msra.mxu0 %v467
    %855 = vmatprep.subr.mxu0 %v472
    %856 = vmatpush1.msra.mxu0 %v471
    %857 = vmatprep.subr.mxu0 %v476
    %858 = vmatpush1.msra.mxu0 %v475
    %859 = vmatprep.subr.mxu0 0.0
    %860 = vmatpush1.msra.mxu0 0.0
    %861 = vmatprep.subr.mxu0 0.0
    %862 = vmatpush1.msra.mxu0 0.0
    %863 = vmatprep.subr.mxu0 0.0
    %864 = vmatpush1.msra.mxu0 0.0
    %865 = vmatprep.subr.mxu0 0.0
    %866 = vmatpush1.msra.mxu0 0.0
    %867 = vmatprep.subr.mxu0 0.0
    %868 = vmatpush1.msra.mxu0 0.0
    %869 = vmatprep.subr.mxu0 0.0
    %870 = vmatpush1.msra.mxu0 0.0
    %871 = vmatprep.subr.mxu0 0.0
    %872 = vmatpush1.msra.mxu0 0.0
    %873 = vmatprep.subr.mxu0 0.0
    %874 = vmatpush1.msra.mxu0 0.0
    %875 = vmatprep.subr.mxu0 0.0
    %876 = vmatpush1.msra.mxu0 0.0
    %877 = vmatprep.subr.mxu0 0.0
    %878 = vmatpush1.msra.mxu0 0.0
    %879 = vmatprep.subr.mxu0 0.0
    %880 = vmatpush1.msra.mxu0 0.0
    %881 = vmatprep.subr.mxu0 0.0
    %882 = vmatpush1.msra.mxu0 0.0
    %883 = vmatprep.subr.mxu0 0.0
    %884 = vmatpush1.msra.mxu0 0.0
    %885 = vmatprep.subr.mxu0 0.0
    %886 = vmatpush1.msra.mxu0 0.0
    %887 = vmatprep.subr.mxu0 0.0
    %888 = vmatpush1.msra.mxu0 0.0
    %889 = vmatprep.subr.mxu0 0.0
    %890 = vmatpush1.msra.mxu0 0.0
    %891 = vmatprep.mubr.f32.mxu0 0.0
    %892 = vmatmul.mubr.f32.gmra.mrb[0].mxu0 %v822
    %v893 = vpop.f32.mrb[0].mxu0
    %v894 = vadd.f32 0.0, %v893
    %v895 = vpop.f32.mrb[0].mxu0
    %v896 = vadd.f32 0.0, %v895
    %897 = vdwg.mxu0
    %898 = vmatprep.subr.mxu0 %v418
    %899 = vmatpush1.msra.mxu0 %v417
    %900 = vmatprep.subr.mxu0 %v422
    %901 = vmatpush1.msra.mxu0 %v421
    %902 = vmatprep.subr.mxu0 %v426
    %903 = vmatpush1.msra.mxu0 %v425
    %904 = vmatprep.subr.mxu0 %v430
    %905 = vmatpush1.msra.mxu0 %v429
    %906 = vmatprep.subr.mxu0 %v434
    %907 = vmatpush1.msra.mxu0 %v433
    %908 = vmatprep.subr.mxu0 %v438
    %909 = vmatpush1.msra.mxu0 %v437
    %910 = vmatprep.subr.mxu0 %v442
    %911 = vmatpush1.msra.mxu0 %v441
    %912 = vmatprep.subr.mxu0 %v446
    %913 = vmatpush1.msra.mxu0 %v445
    %914 = vmatprep.subr.mxu0 %v450
    %915 = vmatpush1.msra.mxu0 %v449
    %916 = vmatprep.subr.mxu0 %v454
    %917 = vmatpush1.msra.mxu0 %v453
    %918 = vmatprep.subr.mxu0 %v458
    %919 = vmatpush1.msra.mxu0 %v457
    %920 = vmatprep.subr.mxu0 %v462
    %921 = vmatpush1.msra.mxu0 %v461
    %922 = vmatprep.subr.mxu0 %v466
    %923 = vmatpush1.msra.mxu0 %v465
    %924 = vmatprep.subr.mxu0 %v470
    %925 = vmatpush1.msra.mxu0 %v469
    %926 = vmatprep.subr.mxu0 %v474
    %927 = vmatpush1.msra.mxu0 %v473
    %928 = vmatprep.subr.mxu0 %v478
    %929 = vmatpush1.msra.mxu0 %v477
    %930 = vmatprep.subr.mxu0 0.0
    %931 = vmatpush1.msra.mxu0 0.0
    %932 = vmatprep.subr.mxu0 0.0
    %933 = vmatpush1.msra.mxu0 0.0
    %934 = vmatprep.subr.mxu0 0.0
    %935 = vmatpush1.msra.mxu0 0.0
    %936 = vmatprep.subr.mxu0 0.0
    %937 = vmatpush1.msra.mxu0 0.0
    %938 = vmatprep.subr.mxu0 0.0
    %939 = vmatpush1.msra.mxu0 0.0
    %940 = vmatprep.subr.mxu0 0.0
    %941 = vmatpush1.msra.mxu0 0.0
    %942 = vmatprep.subr.mxu0 0.0
    %943 = vmatpush1.msra.mxu0 0.0
    %944 = vmatprep.subr.mxu0 0.0
    %945 = vmatpush1.msra.mxu0 0.0
    %946 = vmatprep.subr.mxu0 0.0
    %947 = vmatpush1.msra.mxu0 0.0
    %948 = vmatprep.subr.mxu0 0.0
    %949 = vmatpush1.msra.mxu0 0.0
    %950 = vmatprep.subr.mxu0 0.0
    %951 = vmatpush1.msra.mxu0 0.0
    %952 = vmatprep.subr.mxu0 0.0
    %953 = vmatpush1.msra.mxu0 0.0
    %954 = vmatprep.subr.mxu0 0.0
    %955 = vmatpush1.msra.mxu0 0.0
    %956 = vmatprep.subr.mxu0 0.0
    %957 = vmatpush1.msra.mxu0 0.0
    %958 = vmatprep.subr.mxu0 0.0
    %959 = vmatpush1.msra.mxu0 0.0
    %960 = vmatprep.subr.mxu0 0.0
    %961 = vmatpush1.msra.mxu0 0.0
    %962 = vmatprep.mubr.f32.mxu0 0.0
    %963 = vmatmul.mubr.f32.gmra.mrb[0].mxu0 %v822
    %v964 = vpop.f32.mrb[0].mxu0
    %v965 = vadd.f32 0.0, %v964
    %v966 = vpop.f32.mrb[0].mxu0
    %v967 = vadd.f32 0.0, %v966
    %968 = vdwg.mxu0
    %v969 = vadd.f32 %v823, %v894
    %v970 = vadd.f32 %v824, %v896
    %v971 = vadd.f32 %v825, %v965
    %v972 = vadd.f32 %v826, %v967
    %v973 = vxor.u32 %v969, 2147483648
    %v974 = vmul.f32 %v973, 1.442695
    %v975 = vpow.pop %v974
    %v976 = vadd.f32 %v975, 1.0
    %v977 = vrcp.pop %v976
    %v978 = vmul.f32 1.0, %v977
    %v979 = vxor.u32 %v970, 2147483648
    %v980 = vmul.f32 %v979, 1.442695
    %v981 = vpow.pop %v980
    %v982 = vadd.f32 %v981, 1.0
    %v983 = vrcp.pop %v982
    %v984 = vmul.f32 1.0, %v983
    %v985 = vtanh.pop %v971
    %v986 = vxor.u32 %v972, 2147483648
    %v987 = vmul.f32 %v986, 1.442695
    %v988 = vpow.pop %v987
    %v989 = vadd.f32 %v988, 1.0
    %v990 = vrcp.pop %v989
    %v991 = vmul.f32 1.0, %v990
    %v992 = vmul.f32 %v984, %v820
    %v993 = vmul.f32 %v978, %v985
    %v994 = vadd.f32 %v992, %v993
    %v995 = vtanh.pop %v994
    %v996 = vmul.f32 %v991, %v995
    %v997 = vld [vmem:[#allocation2 + $0x60] sm:$0xff]
    %v998 = vld [vmem:[#allocation2 + $0x68] sm:$0xff]
    %v999 = vld [vmem:[#allocation2 + $0x70] sm:$0xff]
    %v1000 = vld [vmem:[#allocation2 + $0x78] sm:$0xff]
    %1001 = vmatprep.subr.mxu0 %v416
    %1002 = vmatpush1.msra.mxu0 %v415
    %1003 = vmatprep.subr.mxu0 %v420
    %1004 = vmatpush1.msra.mxu0 %v419
    %1005 = vmatprep.subr.mxu0 %v424
    %1006 = vmatpush1.msra.mxu0 %v423
    %1007 = vmatprep.subr.mxu0 %v428
    %1008 = vmatpush1.msra.mxu0 %v427
    %1009 = vmatprep.subr.mxu0 %v432
    %1010 = vmatpush1.msra.mxu0 %v431
    %1011 = vmatprep.subr.mxu0 %v436
    %1012 = vmatpush1.msra.mxu0 %v435
    %1013 = vmatprep.subr.mxu0 %v440
    %1014 = vmatpush1.msra.mxu0 %v439
    %1015 = vmatprep.subr.mxu0 %v444
    %1016 = vmatpush1.msra.mxu0 %v443
    %1017 = vmatprep.subr.mxu0 %v448
    %1018 = vmatpush1.msra.mxu0 %v447
    %1019 = vmatprep.subr.mxu0 %v452
    %1020 = vmatpush1.msra.mxu0 %v451
    %1021 = vmatprep.subr.mxu0 %v456
    %1022 = vmatpush1.msra.mxu0 %v455
    %1023 = vmatprep.subr.mxu0 %v460
    %1024 = vmatpush1.msra.mxu0 %v459
    %1025 = vmatprep.subr.mxu0 %v464
    %1026 = vmatpush1.msra.mxu0 %v463
    %1027 = vmatprep.subr.mxu0 %v468
    %1028 = vmatpush1.msra.mxu0 %v467
    %1029 = vmatprep.subr.mxu0 %v472
    %1030 = vmatpush1.msra.mxu0 %v471
    %1031 = vmatprep.subr.mxu0 %v476
    %1032 = vmatpush1.msra.mxu0 %v475
    %1033 = vmatprep.subr.mxu0 0.0
    %1034 = vmatpush1.msra.mxu0 0.0
    %1035 = vmatprep.subr.mxu0 0.0
    %1036 = vmatpush1.msra.mxu0 0.0
    %1037 = vmatprep.subr.mxu0 0.0
    %1038 = vmatpush1.msra.mxu0 0.0
    %1039 = vmatprep.subr.mxu0 0.0
    %1040 = vmatpush1.msra.mxu0 0.0
    %1041 = vmatprep.subr.mxu0 0.0
    %1042 = vmatpush1.msra.mxu0 0.0
    %1043 = vmatprep.subr.mxu0 0.0
    %1044 = vmatpush1.msra.mxu0 0.0
    %1045 = vmatprep.subr.mxu0 0.0
    %1046 = vmatpush1.msra.mxu0 0.0
    %1047 = vmatprep.subr.mxu0 0.0
    %1048 = vmatpush1.msra.mxu0 0.0
    %1049 = vmatprep.subr.mxu0 0.0
    %1050 = vmatpush1.msra.mxu0 0.0
    %1051 = vmatprep.subr.mxu0 0.0
    %1052 = vmatpush1.msra.mxu0 0.0
    %1053 = vmatprep.subr.mxu0 0.0
    %1054 = vmatpush1.msra.mxu0 0.0
    %1055 = vmatprep.subr.mxu0 0.0
    %1056 = vmatpush1.msra.mxu0 0.0
    %1057 = vmatprep.subr.mxu0 0.0
    %1058 = vmatpush1.msra.mxu0 0.0
    %1059 = vmatprep.subr.mxu0 0.0
    %1060 = vmatpush1.msra.mxu0 0.0
    %1061 = vmatprep.subr.mxu0 0.0
    %1062 = vmatpush1.msra.mxu0 0.0
    %1063 = vmatprep.subr.mxu0 0.0
    %1064 = vmatpush1.msra.mxu0 0.0
    %1065 = vmatprep.mubr.f32.mxu0 0.0
    %1066 = vmatmul.mubr.f32.gmra.mrb[0].mxu0 %v996
    %v1067 = vpop.f32.mrb[0].mxu0
    %v1068 = vadd.f32 0.0, %v1067
    %v1069 = vpop.f32.mrb[0].mxu0
    %v1070 = vadd.f32 0.0, %v1069
    %1071 = vdwg.mxu0
    %1072 = vmatprep.subr.mxu0 %v418
    %1073 = vmatpush1.msra.mxu0 %v417
    %1074 = vmatprep.subr.mxu0 %v422
    %1075 = vmatpush1.msra.mxu0 %v421
    %1076 = vmatprep.subr.mxu0 %v426
    %1077 = vmatpush1.msra.mxu0 %v425
    %1078 = vmatprep.subr.mxu0 %v430
    %1079 = vmatpush1.msra.mxu0 %v429
    %1080 = vmatprep.subr.mxu0 %v434
    %1081 = vmatpush1.msra.mxu0 %v433
    %1082 = vmatprep.subr.mxu0 %v438
    %1083 = vmatpush1.msra.mxu0 %v437
    %1084 = vmatprep.subr.mxu0 %v442
    %1085 = vmatpush1.msra.mxu0 %v441
    %1086 = vmatprep.subr.mxu0 %v446
    %1087 = vmatpush1.msra.mxu0 %v445
    %1088 = vmatprep.subr.mxu0 %v450
    %1089 = vmatpush1.msra.mxu0 %v449
    %1090 = vmatprep.subr.mxu0 %v454
    %1091 = vmatpush1.msra.mxu0 %v453
    %1092 = vmatprep.subr.mxu0 %v458
    %1093 = vmatpush1.msra.mxu0 %v457
    %1094 = vmatprep.subr.mxu0 %v462
    %1095 = vmatpush1.msra.mxu0 %v461
    %1096 = vmatprep.subr.mxu0 %v466
    %1097 = vmatpush1.msra.mxu0 %v465
    %1098 = vmatprep.subr.mxu0 %v470
    %1099 = vmatpush1.msra.mxu0 %v469
    %1100 = vmatprep.subr.mxu0 %v474
    %1101 = vmatpush1.msra.mxu0 %v473
    %1102 = vmatprep.subr.mxu0 %v478
    %1103 = vmatpush1.msra.mxu0 %v477
    %1104 = vmatprep.subr.mxu0 0.0
    %1105 = vmatpush1.msra.mxu0 0.0
    %1106 = vmatprep.subr.mxu0 0.0
    %1107 = vmatpush1.msra.mxu0 0.0
    %1108 = vmatprep.subr.mxu0 0.0
    %1109 = vmatpush1.msra.mxu0 0.0
    %1110 = vmatprep.subr.mxu0 0.0
    %1111 = vmatpush1.msra.mxu0 0.0
    %1112 = vmatprep.subr.mxu0 0.0
    %1113 = vmatpush1.msra.mxu0 0.0
    %1114 = vmatprep.subr.mxu0 0.0
    %1115 = vmatpush1.msra.mxu0 0.0
    %1116 = vmatprep.subr.mxu0 0.0
    %1117 = vmatpush1.msra.mxu0 0.0
    %1118 = vmatprep.subr.mxu0 0.0
    %1119 = vmatpush1.msra.mxu0 0.0
    %1120 = vmatprep.subr.mxu0 0.0
    %1121 = vmatpush1.msra.mxu0 0.0
    %1122 = vmatprep.subr.mxu0 0.0
    %1123 = vmatpush1.msra.mxu0 0.0
    %1124 = vmatprep.subr.mxu0 0.0
    %1125 = vmatpush1.msra.mxu0 0.0
    %1126 = vmatprep.subr.mxu0 0.0
    %1127 = vmatpush1.msra.mxu0 0.0
    %1128 = vmatprep.subr.mxu0 0.0
    %1129 = vmatpush1.msra.mxu0 0.0
    %1130 = vmatprep.subr.mxu0 0.0
    %1131 = vmatpush1.msra.mxu0 0.0
    %1132 = vmatprep.subr.mxu0 0.0
    %1133 = vmatpush1.msra.mxu0 0.0
    %1134 = vmatprep.subr.mxu0 0.0
    %1135 = vmatpush1.msra.mxu0 0.0
    %1136 = vmatprep.mubr.f32.mxu0 0.0
    %1137 = vmatmul.mubr.f32.gmra.mrb[0].mxu0 %v996
    %v1138 = vpop.f32.mrb[0].mxu0
    %v1139 = vadd.f32 0.0, %v1138
    %v1140 = vpop.f32.mrb[0].mxu0
    %v1141 = vadd.f32 0.0, %v1140
    %1142 = vdwg.mxu0
    %v1143 = vadd.f32 %v997, %v1068
    %v1144 = vadd.f32 %v998, %v1070
    %v1145 = vadd.f32 %v999, %v1139
    %v1146 = vadd.f32 %v1000, %v1141
    %v1147 = vxor.u32 %v1143, 2147483648
    %v1148 = vmul.f32 %v1147, 1.442695
    %v1149 = vpow.pop %v1148
    %v1150 = vadd.f32 %v1149, 1.0
    %v1151 = vrcp.pop %v1150
    %v1152 = vmul.f32 1.0, %v1151
    %v1153 = vxor.u32 %v1144, 2147483648
    %v1154 = vmul.f32 %v1153, 1.442695
    %v1155 = vpow.pop %v1154
    %v1156 = vadd.f32 %v1155, 1.0
    %v1157 = vrcp.pop %v1156
    %v1158 = vmul.f32 1.0, %v1157
    %v1159 = vtanh.pop %v1145
    %v1160 = vxor.u32 %v1146, 2147483648
    %v1161 = vmul.f32 %v1160, 1.442695
    %v1162 = vpow.pop %v1161
    %v1163 = vadd.f32 %v1162, 1.0
    %v1164 = vrcp.pop %v1163
    %v1165 = vmul.f32 1.0, %v1164
    %v1166 = vmul.f32 %v1158, %v994
    %v1167 = vmul.f32 %v1152, %v1159
    %v1168 = vadd.f32 %v1166, %v1167
    %v1169 = vtanh.pop %v1168
    %v1170 = vmul.f32 %v1165, %v1169
    %v1171 = vld [vmem:[#allocation2 + $0x80] sm:$0xff]
    %v1172 = vld [vmem:[#allocation2 + $0x88] sm:$0xff]
    %v1173 = vld [vmem:[#allocation2 + $0x90] sm:$0xff]
    %v1174 = vld [vmem:[#allocation2 + $0x98] sm:$0xff]
    %1175 = vmatprep.subr.mxu0 %v416
    %1176 = vmatpush1.msra.mxu0 %v415
    %1177 = vmatprep.subr.mxu0 %v420
    %1178 = vmatpush1.msra.mxu0 %v419
    %1179 = vmatprep.subr.mxu0 %v424
    %1180 = vmatpush1.msra.mxu0 %v423
    %1181 = vmatprep.subr.mxu0 %v428
    %1182 = vmatpush1.msra.mxu0 %v427
    %1183 = vmatprep.subr.mxu0 %v432
    %1184 = vmatpush1.msra.mxu0 %v431
    %1185 = vmatprep.subr.mxu0 %v436
    %1186 = vmatpush1.msra.mxu0 %v435
    %1187 = vmatprep.subr.mxu0 %v440
    %1188 = vmatpush1.msra.mxu0 %v439
    %1189 = vmatprep.subr.mxu0 %v444
    %1190 = vmatpush1.msra.mxu0 %v443
    %1191 = vmatprep.subr.mxu0 %v448
    %1192 = vmatpush1.msra.mxu0 %v447
    %1193 = vmatprep.subr.mxu0 %v452
    %1194 = vmatpush1.msra.mxu0 %v451
    %1195 = vmatprep.subr.mxu0 %v456
    %1196 = vmatpush1.msra.mxu0 %v455
    %1197 = vmatprep.subr.mxu0 %v460
    %1198 = vmatpush1.msra.mxu0 %v459
    %1199 = vmatprep.subr.mxu0 %v464
    %1200 = vmatpush1.msra.mxu0 %v463
    %1201 = vmatprep.subr.mxu0 %v468
    %1202 = vmatpush1.msra.mxu0 %v467
    %1203 = vmatprep.subr.mxu0 %v472
    %1204 = vmatpush1.msra.mxu0 %v471
    %1205 = vmatprep.subr.mxu0 %v476
    %1206 = vmatpush1.msra.mxu0 %v475
    %1207 = vmatprep.subr.mxu0 0.0
    %1208 = vmatpush1.msra.mxu0 0.0
    %1209 = vmatprep.subr.mxu0 0.0
    %1210 = vmatpush1.msra.mxu0 0.0
    %1211 = vmatprep.subr.mxu0 0.0
    %1212 = vmatpush1.msra.mxu0 0.0
    %1213 = vmatprep.subr.mxu0 0.0
    %1214 = vmatpush1.msra.mxu0 0.0
    %1215 = vmatprep.subr.mxu0 0.0
    %1216 = vmatpush1.msra.mxu0 0.0
    %1217 = vmatprep.subr.mxu0 0.0
    %1218 = vmatpush1.msra.mxu0 0.0
    %1219 = vmatprep.subr.mxu0 0.0
    %1220 = vmatpush1.msra.mxu0 0.0
    %1221 = vmatprep.subr.mxu0 0.0
    %1222 = vmatpush1.msra.mxu0 0.0
    %1223 = vmatprep.subr.mxu0 0.0
    %1224 = vmatpush1.msra.mxu0 0.0
    %1225 = vmatprep.subr.mxu0 0.0
    %1226 = vmatpush1.msra.mxu0 0.0
    %1227 = vmatprep.subr.mxu0 0.0
    %1228 = vmatpush1.msra.mxu0 0.0
    %1229 = vmatprep.subr.mxu0 0.0
    %1230 = vmatpush1.msra.mxu0 0.0
    %1231 = vmatprep.subr.mxu0 0.0
    %1232 = vmatpush1.msra.mxu0 0.0
    %1233 = vmatprep.subr.mxu0 0.0
    %1234 = vmatpush1.msra.mxu0 0.0
    %1235 = vmatprep.subr.mxu0 0.0
    %1236 = vmatpush1.msra.mxu0 0.0
    %1237 = vmatprep.subr.mxu0 0.0
    %1238 = vmatpush1.msra.mxu0 0.0
    %1239 = vmatprep.mubr.f32.mxu0 0.0
    %1240 = vmatmul.mubr.f32.gmra.mrb[0].mxu0 %v1170
    %v1241 = vpop.f32.mrb[0].mxu0
    %v1242 = vadd.f32 0.0, %v1241
    %v1243 = vpop.f32.mrb[0].mxu0
    %v1244 = vadd.f32 0.0, %v1243
    %1245 = vdwg.mxu0
    %1246 = vmatprep.subr.mxu0 %v418
    %1247 = vmatpush1.msra.mxu0 %v417
    %1248 = vmatprep.subr.mxu0 %v422
    %1249 = vmatpush1.msra.mxu0 %v421
    %1250 = vmatprep.subr.mxu0 %v426
    %1251 = vmatpush1.msra.mxu0 %v425
    %1252 = vmatprep.subr.mxu0 %v430
    %1253 = vmatpush1.msra.mxu0 %v429
    %1254 = vmatprep.subr.mxu0 %v434
    %1255 = vmatpush1.msra.mxu0 %v433
    %1256 = vmatprep.subr.mxu0 %v438
    %1257 = vmatpush1.msra.mxu0 %v437
    %1258 = vmatprep.subr.mxu0 %v442
    %1259 = vmatpush1.msra.mxu0 %v441
    %1260 = vmatprep.subr.mxu0 %v446
    %1261 = vmatpush1.msra.mxu0 %v445
    %1262 = vmatprep.subr.mxu0 %v450
    %1263 = vmatpush1.msra.mxu0 %v449
    %1264 = vmatprep.subr.mxu0 %v454
    %1265 = vmatpush1.msra.mxu0 %v453
    %1266 = vmatprep.subr.mxu0 %v458
    %1267 = vmatpush1.msra.mxu0 %v457
    %1268 = vmatprep.subr.mxu0 %v462
    %1269 = vmatpush1.msra.mxu0 %v461
    %1270 = vmatprep.subr.mxu0 %v466
    %1271 = vmatpush1.msra.mxu0 %v465
    %1272 = vmatprep.subr.mxu0 %v470
    %1273 = vmatpush1.msra.mxu0 %v469
    %1274 = vmatprep.subr.mxu0 %v474
    %1275 = vmatpush1.msra.mxu0 %v473
    %1276 = vmatprep.subr.mxu0 %v478
    %1277 = vmatpush1.msra.mxu0 %v477
    %1278 = vmatprep.subr.mxu0 0.0
    %1279 = vmatpush1.msra.mxu0 0.0
    %1280 = vmatprep.subr.mxu0 0.0
    %1281 = vmatpush1.msra.mxu0 0.0
    %1282 = vmatprep.subr.mxu0 0.0
    %1283 = vmatpush1.msra.mxu0 0.0
    %1284 = vmatprep.subr.mxu0 0.0
    %1285 = vmatpush1.msra.mxu0 0.0
    %1286 = vmatprep.subr.mxu0 0.0
    %1287 = vmatpush1.msra.mxu0 0.0
    %1288 = vmatprep.subr.mxu0 0.0
    %1289 = vmatpush1.msra.mxu0 0.0
    %1290 = vmatprep.subr.mxu0 0.0
    %1291 = vmatpush1.msra.mxu0 0.0
    %1292 = vmatprep.subr.mxu0 0.0
    %1293 = vmatpush1.msra.mxu0 0.0
    %1294 = vmatprep.subr.mxu0 0.0
    %1295 = vmatpush1.msra.mxu0 0.0
    %1296 = vmatprep.subr.mxu0 0.0
    %1297 = vmatpush1.msra.mxu0 0.0
    %1298 = vmatprep.subr.mxu0 0.0
    %1299 = vmatpush1.msra.mxu0 0.0
    %1300 = vmatprep.subr.mxu0 0.0
    %1301 = vmatpush1.msra.mxu0 0.0
    %1302 = vmatprep.subr.mxu0 0.0
    %1303 = vmatpush1.msra.mxu0 0.0
    %1304 = vmatprep.subr.mxu0 0.0
    %1305 = vmatpush1.msra.mxu0 0.0
    %1306 = vmatprep.subr.mxu0 0.0
    %1307 = vmatpush1.msra.mxu0 0.0
    %1308 = vmatprep.subr.mxu0 0.0
    %1309 = vmatpush1.msra.mxu0 0.0
    %1310 = vmatprep.mubr.f32.mxu0 0.0
    %1311 = vmatmul.mubr.f32.gmra.mrb[0].mxu0 %v1170
    %v1312 = vpop.f32.mrb[0].mxu0
    %v1313 = vadd.f32 0.0, %v1312
    %v1314 = vpop.f32.mrb[0].mxu0
    %v1315 = vadd.f32 0.0, %v1314
    %1316 = vdwg.mxu0
    %v1317 = vadd.f32 %v1171, %v1242
    %v1318 = vadd.f32 %v1172, %v1244
    %v1319 = vadd.f32 %v1173, %v1313
    %v1320 = vadd.f32 %v1174, %v1315
    %v1321 = vxor.u32 %v1317, 2147483648
    %v1322 = vmul.f32 %v1321, 1.442695
    %v1323 = vpow.pop %v1322
    %v1324 = vadd.f32 %v1323, 1.0
    %v1325 = vrcp.pop %v1324
    %v1326 = vmul.f32 1.0, %v1325
    %v1327 = vxor.u32 %v1318, 2147483648
    %v1328 = vmul.f32 %v1327, 1.442695
    %v1329 = vpow.pop %v1328
    %v1330 = vadd.f32 %v1329, 1.0
    %v1331 = vrcp.pop %v1330
    %v1332 = vmul.f32 1.0, %v1331
    %v1333 = vtanh.pop %v1319
    %v1334 = vxor.u32 %v1320, 2147483648
    %v1335 = vmul.f32 %v1334, 1.442695
    %v1336 = vpow.pop %v1335
    %v1337 = vadd.f32 %v1336, 1.0
    %v1338 = vrcp.pop %v1337
    %v1339 = vmul.f32 1.0, %v1338
    %v1340 = vmul.f32 %v1332, %v1168
    %v1341 = vmul.f32 %v1326, %v1333
    %v1342 = vadd.f32 %v1340, %v1341
    %v1343 = vtanh.pop %v1342
    %v1344 = vmul.f32 %v1339, %v1343
    %v1345 = vld [vmem:[#allocation2 + $0xa0] sm:$0xff]
    %v1346 = vld [vmem:[#allocation2 + $0xa8] sm:$0xff]
    %v1347 = vld [vmem:[#allocation2 + $0xb0] sm:$0xff]
    %v1348 = vld [vmem:[#allocation2 + $0xb8] sm:$0xff]
    %1349 = vmatprep.subr.mxu0 %v416
    %1350 = vmatpush1.msra.mxu0 %v415
    %1351 = vmatprep.subr.mxu0 %v420
    %1352 = vmatpush1.msra.mxu0 %v419
    %1353 = vmatprep.subr.mxu0 %v424
    %1354 = vmatpush1.msra.mxu0 %v423
    %1355 = vmatprep.subr.mxu0 %v428
    %1356 = vmatpush1.msra.mxu0 %v427
    %1357 = vmatprep.subr.mxu0 %v432
    %1358 = vmatpush1.msra.mxu0 %v431
    %1359 = vmatprep.subr.mxu0 %v436
    %1360 = vmatpush1.msra.mxu0 %v435
    %1361 = vmatprep.subr.mxu0 %v440
    %1362 = vmatpush1.msra.mxu0 %v439
    %1363 = vmatprep.subr.mxu0 %v444
    %1364 = vmatpush1.msra.mxu0 %v443
    %1365 = vmatprep.subr.mxu0 %v448
    %1366 = vmatpush1.msra.mxu0 %v447
    %1367 = vmatprep.subr.mxu0 %v452
    %1368 = vmatpush1.msra.mxu0 %v451
    %1369 = vmatprep.subr.mxu0 %v456
    %1370 = vmatpush1.msra.mxu0 %v455
    %1371 = vmatprep.subr.mxu0 %v460
    %1372 = vmatpush1.msra.mxu0 %v459
    %1373 = vmatprep.subr.mxu0 %v464
    %1374 = vmatpush1.msra.mxu0 %v463
    %1375 = vmatprep.subr.mxu0 %v468
    %1376 = vmatpush1.msra.mxu0 %v467
    %1377 = vmatprep.subr.mxu0 %v472
    %1378 = vmatpush1.msra.mxu0 %v471
    %1379 = vmatprep.subr.mxu0 %v476
    %1380 = vmatpush1.msra.mxu0 %v475
    %1381 = vmatprep.subr.mxu0 0.0
    %1382 = vmatpush1.msra.mxu0 0.0
    %1383 = vmatprep.subr.mxu0 0.0
    %1384 = vmatpush1.msra.mxu0 0.0
    %1385 = vmatprep.subr.mxu0 0.0
    %1386 = vmatpush1.msra.mxu0 0.0
    %1387 = vmatprep.subr.mxu0 0.0
    %1388 = vmatpush1.msra.mxu0 0.0
    %1389 = vmatprep.subr.mxu0 0.0
    %1390 = vmatpush1.msra.mxu0 0.0
    %1391 = vmatprep.subr.mxu0 0.0
    %1392 = vmatpush1.msra.mxu0 0.0
    %1393 = vmatprep.subr.mxu0 0.0
    %1394 = vmatpush1.msra.mxu0 0.0
    %1395 = vmatprep.subr.mxu0 0.0
    %1396 = vmatpush1.msra.mxu0 0.0
    %1397 = vmatprep.subr.mxu0 0.0
    %1398 = vmatpush1.msra.mxu0 0.0
    %1399 = vmatprep.subr.mxu0 0.0
    %1400 = vmatpush1.msra.mxu0 0.0
    %1401 = vmatprep.subr.mxu0 0.0
    %1402 = vmatpush1.msra.mxu0 0.0
    %1403 = vmatprep.subr.mxu0 0.0
    %1404 = vmatpush1.msra.mxu0 0.0
    %1405 = vmatprep.subr.mxu0 0.0
    %1406 = vmatpush1.msra.mxu0 0.0
    %1407 = vmatprep.subr.mxu0 0.0
    %1408 = vmatpush1.msra.mxu0 0.0
    %1409 = vmatprep.subr.mxu0 0.0
    %1410 = vmatpush1.msra.mxu0 0.0
    %1411 = vmatprep.subr.mxu0 0.0
    %1412 = vmatpush1.msra.mxu0 0.0
    %1413 = vmatprep.mubr.f32.mxu0 0.0
    %1414 = vmatmul.mubr.f32.gmra.mrb[0].mxu0 %v1344
    %v1415 = vpop.f32.mrb[0].mxu0
    %v1416 = vadd.f32 0.0, %v1415
    %v1417 = vpop.f32.mrb[0].mxu0
    %v1418 = vadd.f32 0.0, %v1417
    %1419 = vdwg.mxu0
    %1420 = vmatprep.subr.mxu0 %v418
    %1421 = vmatpush1.msra.mxu0 %v417
    %1422 = vmatprep.subr.mxu0 %v422
    %1423 = vmatpush1.msra.mxu0 %v421
    %1424 = vmatprep.subr.mxu0 %v426
    %1425 = vmatpush1.msra.mxu0 %v425
    %1426 = vmatprep.subr.mxu0 %v430
    %1427 = vmatpush1.msra.mxu0 %v429
    %1428 = vmatprep.subr.mxu0 %v434
    %1429 = vmatpush1.msra.mxu0 %v433
    %1430 = vmatprep.subr.mxu0 %v438
    %1431 = vmatpush1.msra.mxu0 %v437
    %1432 = vmatprep.subr.mxu0 %v442
    %1433 = vmatpush1.msra.mxu0 %v441
    %1434 = vmatprep.subr.mxu0 %v446
    %1435 = vmatpush1.msra.mxu0 %v445
    %1436 = vmatprep.subr.mxu0 %v450
    %1437 = vmatpush1.msra.mxu0 %v449
    %1438 = vmatprep.subr.mxu0 %v454
    %1439 = vmatpush1.msra.mxu0 %v453
    %1440 = vmatprep.subr.mxu0 %v458
    %1441 = vmatpush1.msra.mxu0 %v457
    %1442 = vmatprep.subr.mxu0 %v462
    %1443 = vmatpush1.msra.mxu0 %v461
    %1444 = vmatprep.subr.mxu0 %v466
    %1445 = vmatpush1.msra.mxu0 %v465
    %1446 = vmatprep.subr.mxu0 %v470
    %1447 = vmatpush1.msra.mxu0 %v469
    %1448 = vmatprep.subr.mxu0 %v474
    %1449 = vmatpush1.msra.mxu0 %v473
    %1450 = vmatprep.subr.mxu0 %v478
    %1451 = vmatpush1.msra.mxu0 %v477
    %1452 = vmatprep.subr.mxu0 0.0
    %1453 = vmatpush1.msra.mxu0 0.0
    %1454 = vmatprep.subr.mxu0 0.0
    %1455 = vmatpush1.msra.mxu0 0.0
    %1456 = vmatprep.subr.mxu0 0.0
    %1457 = vmatpush1.msra.mxu0 0.0
    %1458 = vmatprep.subr.mxu0 0.0
    %1459 = vmatpush1.msra.mxu0 0.0
    %1460 = vmatprep.subr.mxu0 0.0
    %1461 = vmatpush1.msra.mxu0 0.0
    %1462 = vmatprep.subr.mxu0 0.0
    %1463 = vmatpush1.msra.mxu0 0.0
    %1464 = vmatprep.subr.mxu0 0.0
    %1465 = vmatpush1.msra.mxu0 0.0
    %1466 = vmatprep.subr.mxu0 0.0
    %1467 = vmatpush1.msra.mxu0 0.0
    %1468 = vmatprep.subr.mxu0 0.0
    %1469 = vmatpush1.msra.mxu0 0.0
    %1470 = vmatprep.subr.mxu0 0.0
    %1471 = vmatpush1.msra.mxu0 0.0
    %1472 = vmatprep.subr.mxu0 0.0
    %1473 = vmatpush1.msra.mxu0 0.0
    %1474 = vmatprep.subr.mxu0 0.0
    %1475 = vmatpush1.msra.mxu0 0.0
    %1476 = vmatprep.subr.mxu0 0.0
    %1477 = vmatpush1.msra.mxu0 0.0
    %1478 = vmatprep.subr.mxu0 0.0
    %1479 = vmatpush1.msra.mxu0 0.0
    %1480 = vmatprep.subr.mxu0 0.0
    %1481 = vmatpush1.msra.mxu0 0.0
    %1482 = vmatprep.subr.mxu0 0.0
    %1483 = vmatpush1.msra.mxu0 0.0
    %1484 = vmatprep.mubr.f32.mxu0 0.0
    %1485 = vmatmul.mubr.f32.gmra.mrb[0].mxu0 %v1344
    %v1486 = vpop.f32.mrb[0].mxu0
    %v1487 = vadd.f32 0.0, %v1486
    %v1488 = vpop.f32.mrb[0].mxu0
    %v1489 = vadd.f32 0.0, %v1488
    %1490 = vdwg.mxu0
    %v1491 = vadd.f32 %v1345, %v1416
    %v1492 = vadd.f32 %v1346, %v1418
    %v1493 = vadd.f32 %v1347, %v1487
    %v1494 = vadd.f32 %v1348, %v1489
    %v1495 = vxor.u32 %v1491, 2147483648
    %v1496 = vmul.f32 %v1495, 1.442695
    %v1497 = vpow.pop %v1496
    %v1498 = vadd.f32 %v1497, 1.0
    %v1499 = vrcp.pop %v1498
    %v1500 = vmul.f32 1.0, %v1499
    %v1501 = vxor.u32 %v1492, 2147483648
    %v1502 = vmul.f32 %v1501, 1.442695
    %v1503 = vpow.pop %v1502
    %v1504 = vadd.f32 %v1503, 1.0
    %v1505 = vrcp.pop %v1504
    %v1506 = vmul.f32 1.0, %v1505
    %v1507 = vtanh.pop %v1493
    %v1508 = vxor.u32 %v1494, 2147483648
    %v1509 = vmul.f32 %v1508, 1.442695
    %v1510 = vpow.pop %v1509
    %v1511 = vadd.f32 %v1510, 1.0
    %v1512 = vrcp.pop %v1511
    %v1513 = vmul.f32 1.0, %v1512
    %v1514 = vmul.f32 %v1506, %v1342
    %v1515 = vmul.f32 %v1500, %v1507
    %v1516 = vadd.f32 %v1514, %v1515
    %v1517 = vtanh.pop %v1516
    %v1518 = vmul.f32 %v1513, %v1517
    %v1519 = vld [vmem:[#allocation2 + $0xc0] sm:$0xff]
    %v1520 = vld [vmem:[#allocation2 + $0xc8] sm:$0xff]
    %v1521 = vld [vmem:[#allocation2 + $0xd0] sm:$0xff]
    %v1522 = vld [vmem:[#allocation2 + $0xd8] sm:$0xff]
    %1523 = vmatprep.subr.mxu0 %v416
    %1524 = vmatpush1.msra.mxu0 %v415
    %1525 = vmatprep.subr.mxu0 %v420
    %1526 = vmatpush1.msra.mxu0 %v419
    %1527 = vmatprep.subr.mxu0 %v424
    %1528 = vmatpush1.msra.mxu0 %v423
    %1529 = vmatprep.subr.mxu0 %v428
    %1530 = vmatpush1.msra.mxu0 %v427
    %1531 = vmatprep.subr.mxu0 %v432
    %1532 = vmatpush1.msra.mxu0 %v431
    %1533 = vmatprep.subr.mxu0 %v436
    %1534 = vmatpush1.msra.mxu0 %v435
    %1535 = vmatprep.subr.mxu0 %v440
    %1536 = vmatpush1.msra.mxu0 %v439
    %1537 = vmatprep.subr.mxu0 %v444
    %1538 = vmatpush1.msra.mxu0 %v443
    %1539 = vmatprep.subr.mxu0 %v448
    %1540 = vmatpush1.msra.mxu0 %v447
    %1541 = vmatprep.subr.mxu0 %v452
    %1542 = vmatpush1.msra.mxu0 %v451
    %1543 = vmatprep.subr.mxu0 %v456
    %1544 = vmatpush1.msra.mxu0 %v455
    %1545 = vmatprep.subr.mxu0 %v460
    %1546 = vmatpush1.msra.mxu0 %v459
    %1547 = vmatprep.subr.mxu0 %v464
    %1548 = vmatpush1.msra.mxu0 %v463
    %1549 = vmatprep.subr.mxu0 %v468
    %1550 = vmatpush1.msra.mxu0 %v467
    %1551 = vmatprep.subr.mxu0 %v472
    %1552 = vmatpush1.msra.mxu0 %v471
    %1553 = vmatprep.subr.mxu0 %v476
    %1554 = vmatpush1.msra.mxu0 %v475
    %1555 = vmatprep.subr.mxu0 0.0
    %1556 = vmatpush1.msra.mxu0 0.0
    %1557 = vmatprep.subr.mxu0 0.0
    %1558 = vmatpush1.msra.mxu0 0.0
    %1559 = vmatprep.subr.mxu0 0.0
    %1560 = vmatpush1.msra.mxu0 0.0
    %1561 = vmatprep.subr.mxu0 0.0
    %1562 = vmatpush1.msra.mxu0 0.0
    %1563 = vmatprep.subr.mxu0 0.0
    %1564 = vmatpush1.msra.mxu0 0.0
    %1565 = vmatprep.subr.mxu0 0.0
    %1566 = vmatpush1.msra.mxu0 0.0
    %1567 = vmatprep.subr.mxu0 0.0
    %1568 = vmatpush1.msra.mxu0 0.0
    %1569 = vmatprep.subr.mxu0 0.0
    %1570 = vmatpush1.msra.mxu0 0.0
    %1571 = vmatprep.subr.mxu0 0.0
    %1572 = vmatpush1.msra.mxu0 0.0
    %1573 = vmatprep.subr.mxu0 0.0
    %1574 = vmatpush1.msra.mxu0 0.0
    %1575 = vmatprep.subr.mxu0 0.0
    %1576 = vmatpush1.msra.mxu0 0.0
    %1577 = vmatprep.subr.mxu0 0.0
    %1578 = vmatpush1.msra.mxu0 0.0
    %1579 = vmatprep.subr.mxu0 0.0
    %1580 = vmatpush1.msra.mxu0 0.0
    %1581 = vmatprep.subr.mxu0 0.0
    %1582 = vmatpush1.msra.mxu0 0.0
    %1583 = vmatprep.subr.mxu0 0.0
    %1584 = vmatpush1.msra.mxu0 0.0
    %1585 = vmatprep.subr.mxu0 0.0
    %1586 = vmatpush1.msra.mxu0 0.0
    %1587 = vmatprep.mubr.f32.mxu0 0.0
    %1588 = vmatmul.mubr.f32.gmra.mrb[0].mxu0 %v1518
    %v1589 = vpop.f32.mrb[0].mxu0
    %v1590 = vadd.f32 0.0, %v1589
    %v1591 = vpop.f32.mrb[0].mxu0
    %v1592 = vadd.f32 0.0, %v1591
    %1593 = vdwg.mxu0
    %1594 = vmatprep.subr.mxu0 %v418
    %1595 = vmatpush1.msra.mxu0 %v417
    %1596 = vmatprep.subr.mxu0 %v422
    %1597 = vmatpush1.msra.mxu0 %v421
    %1598 = vmatprep.subr.mxu0 %v426
    %1599 = vmatpush1.msra.mxu0 %v425
    %1600 = vmatprep.subr.mxu0 %v430
    %1601 = vmatpush1.msra.mxu0 %v429
    %1602 = vmatprep.subr.mxu0 %v434
    %1603 = vmatpush1.msra.mxu0 %v433
    %1604 = vmatprep.subr.mxu0 %v438
    %1605 = vmatpush1.msra.mxu0 %v437
    %1606 = vmatprep.subr.mxu0 %v442
    %1607 = vmatpush1.msra.mxu0 %v441
    %1608 = vmatprep.subr.mxu0 %v446
    %1609 = vmatpush1.msra.mxu0 %v445
    %1610 = vmatprep.subr.mxu0 %v450
    %1611 = vmatpush1.msra.mxu0 %v449
    %1612 = vmatprep.subr.mxu0 %v454
    %1613 = vmatpush1.msra.mxu0 %v453
    %1614 = vmatprep.subr.mxu0 %v458
    %1615 = vmatpush1.msra.mxu0 %v457
    %1616 = vmatprep.subr.mxu0 %v462
    %1617 = vmatpush1.msra.mxu0 %v461
    %1618 = vmatprep.subr.mxu0 %v466
    %1619 = vmatpush1.msra.mxu0 %v465
    %1620 = vmatprep.subr.mxu0 %v470
    %1621 = vmatpush1.msra.mxu0 %v469
    %1622 = vmatprep.subr.mxu0 %v474
    %1623 = vmatpush1.msra.mxu0 %v473
    %1624 = vmatprep.subr.mxu0 %v478
    %1625 = vmatpush1.msra.mxu0 %v477
    %1626 = vmatprep.subr.mxu0 0.0
    %1627 = vmatpush1.msra.mxu0 0.0
    %1628 = vmatprep.subr.mxu0 0.0
    %1629 = vmatpush1.msra.mxu0 0.0
    %1630 = vmatprep.subr.mxu0 0.0
    %1631 = vmatpush1.msra.mxu0 0.0
    %1632 = vmatprep.subr.mxu0 0.0
    %1633 = vmatpush1.msra.mxu0 0.0
    %1634 = vmatprep.subr.mxu0 0.0
    %1635 = vmatpush1.msra.mxu0 0.0
    %1636 = vmatprep.subr.mxu0 0.0
    %1637 = vmatpush1.msra.mxu0 0.0
    %1638 = vmatprep.subr.mxu0 0.0
    %1639 = vmatpush1.msra.mxu0 0.0
    %1640 = vmatprep.subr.mxu0 0.0
    %1641 = vmatpush1.msra.mxu0 0.0
    %1642 = vmatprep.subr.mxu0 0.0
    %1643 = vmatpush1.msra.mxu0 0.0
    %1644 = vmatprep.subr.mxu0 0.0
    %1645 = vmatpush1.msra.mxu0 0.0
    %1646 = vmatprep.subr.mxu0 0.0
    %1647 = vmatpush1.msra.mxu0 0.0
    %1648 = vmatprep.subr.mxu0 0.0
    %1649 = vmatpush1.msra.mxu0 0.0
    %1650 = vmatprep.subr.mxu0 0.0
    %1651 = vmatpush1.msra.mxu0 0.0
    %1652 = vmatprep.subr.mxu0 0.0
    %1653 = vmatpush1.msra.mxu0 0.0
    %1654 = vmatprep.subr.mxu0 0.0
    %1655 = vmatpush1.msra.mxu0 0.0
    %1656 = vmatprep.subr.mxu0 0.0
    %1657 = vmatpush1.msra.mxu0 0.0
    %1658 = vmatprep.mubr.f32.mxu0 0.0
    %1659 = vmatmul.mubr.f32.gmra.mrb[0].mxu0 %v1518
    %v1660 = vpop.f32.mrb[0].mxu0
    %v1661 = vadd.f32 0.0, %v1660
    %v1662 = vpop.f32.mrb[0].mxu0
    %v1663 = vadd.f32 0.0, %v1662
    %1664 = vdwg.mxu0
    %v1665 = vadd.f32 %v1519, %v1590
    %v1666 = vadd.f32 %v1520, %v1592
    %v1667 = vadd.f32 %v1521, %v1661
    %v1668 = vadd.f32 %v1522, %v1663
    %v1669 = vxor.u32 %v1665, 2147483648
    %v1670 = vmul.f32 %v1669, 1.442695
    %v1671 = vpow.pop %v1670
    %v1672 = vadd.f32 %v1671, 1.0
    %v1673 = vrcp.pop %v1672
    %v1674 = vmul.f32 1.0, %v1673
    %v1675 = vxor.u32 %v1666, 2147483648
    %v1676 = vmul.f32 %v1675, 1.442695
    %v1677 = vpow.pop %v1676
    %v1678 = vadd.f32 %v1677, 1.0
    %v1679 = vrcp.pop %v1678
    %v1680 = vmul.f32 1.0, %v1679
    %v1681 = vtanh.pop %v1667
    %v1682 = vxor.u32 %v1668, 2147483648
    %v1683 = vmul.f32 %v1682, 1.442695
    %v1684 = vpow.pop %v1683
    %v1685 = vadd.f32 %v1684, 1.0
    %v1686 = vrcp.pop %v1685
    %v1687 = vmul.f32 1.0, %v1686
    %v1688 = vmul.f32 %v1680, %v1516
    %v1689 = vmul.f32 %v1674, %v1681
    %v1690 = vadd.f32 %v1688, %v1689
    %v1691 = vtanh.pop %v1690
    %v1692 = vmul.f32 %v1687, %v1691
    %v1693 = vld [vmem:[#allocation2 + $0xe0] sm:$0xff]
    %v1694 = vld [vmem:[#allocation2 + $0xe8] sm:$0xff]
    %v1695 = vld [vmem:[#allocation2 + $0xf0] sm:$0xff]
    %v1696 = vld [vmem:[#allocation2 + $0xf8] sm:$0xff]
    %1697 = vmatprep.subr.mxu0 %v416
    %1698 = vmatpush1.msra.mxu0 %v415
    %1699 = vmatprep.subr.mxu0 %v420
    %1700 = vmatpush1.msra.mxu0 %v419
    %1701 = vmatprep.subr.mxu0 %v424
    %1702 = vmatpush1.msra.mxu0 %v423
    %1703 = vmatprep.subr.mxu0 %v428
    %1704 = vmatpush1.msra.mxu0 %v427
    %1705 = vmatprep.subr.mxu0 %v432
    %1706 = vmatpush1.msra.mxu0 %v431
    %1707 = vmatprep.subr.mxu0 %v436
    %1708 = vmatpush1.msra.mxu0 %v435
    %1709 = vmatprep.subr.mxu0 %v440
    %1710 = vmatpush1.msra.mxu0 %v439
    %1711 = vmatprep.subr.mxu0 %v444
    %1712 = vmatpush1.msra.mxu0 %v443
    %1713 = vmatprep.subr.mxu0 %v448
    %1714 = vmatpush1.msra.mxu0 %v447
    %1715 = vmatprep.subr.mxu0 %v452
    %1716 = vmatpush1.msra.mxu0 %v451
    %1717 = vmatprep.subr.mxu0 %v456
    %1718 = vmatpush1.msra.mxu0 %v455
    %1719 = vmatprep.subr.mxu0 %v460
    %1720 = vmatpush1.msra.mxu0 %v459
    %1721 = vmatprep.subr.mxu0 %v464
    %1722 = vmatpush1.msra.mxu0 %v463
    %1723 = vmatprep.subr.mxu0 %v468
    %1724 = vmatpush1.msra.mxu0 %v467
    %1725 = vmatprep.subr.mxu0 %v472
    %1726 = vmatpush1.msra.mxu0 %v471
    %1727 = vmatprep.subr.mxu0 %v476
    %1728 = vmatpush1.msra.mxu0 %v475
    %1729 = vmatprep.subr.mxu0 0.0
    %1730 = vmatpush1.msra.mxu0 0.0
    %1731 = vmatprep.subr.mxu0 0.0
    %1732 = vmatpush1.msra.mxu0 0.0
    %1733 = vmatprep.subr.mxu0 0.0
    %1734 = vmatpush1.msra.mxu0 0.0
    %1735 = vmatprep.subr.mxu0 0.0
    %1736 = vmatpush1.msra.mxu0 0.0
    %1737 = vmatprep.subr.mxu0 0.0
    %1738 = vmatpush1.msra.mxu0 0.0
    %1739 = vmatprep.subr.mxu0 0.0
    %1740 = vmatpush1.msra.mxu0 0.0
    %1741 = vmatprep.subr.mxu0 0.0
    %1742 = vmatpush1.msra.mxu0 0.0
    %1743 = vmatprep.subr.mxu0 0.0
    %1744 = vmatpush1.msra.mxu0 0.0
    %1745 = vmatprep.subr.mxu0 0.0
    %1746 = vmatpush1.msra.mxu0 0.0
    %1747 = vmatprep.subr.mxu0 0.0
    %1748 = vmatpush1.msra.mxu0 0.0
    %1749 = vmatprep.subr.mxu0 0.0
    %1750 = vmatpush1.msra.mxu0 0.0
    %1751 = vmatprep.subr.mxu0 0.0
    %1752 = vmatpush1.msra.mxu0 0.0
    %1753 = vmatprep.subr.mxu0 0.0
    %1754 = vmatpush1.msra.mxu0 0.0
    %1755 = vmatprep.subr.mxu0 0.0
    %1756 = vmatpush1.msra.mxu0 0.0
    %1757 = vmatprep.subr.mxu0 0.0
    %1758 = vmatpush1.msra.mxu0 0.0
    %1759 = vmatprep.subr.mxu0 0.0
    %1760 = vmatpush1.msra.mxu0 0.0
    %1761 = vmatprep.mubr.f32.mxu0 0.0
    %1762 = vmatmul.mubr.f32.gmra.mrb[0].mxu0 %v1692
    %v1763 = vpop.f32.mrb[0].mxu0
    %v1764 = vadd.f32 0.0, %v1763
    %v1765 = vpop.f32.mrb[0].mxu0
    %v1766 = vadd.f32 0.0, %v1765
    %1767 = vdwg.mxu0
    %1768 = vmatprep.subr.mxu0 %v418
    %1769 = vmatpush1.msra.mxu0 %v417
    %1770 = vmatprep.subr.mxu0 %v422
    %1771 = vmatpush1.msra.mxu0 %v421
    %1772 = vmatprep.subr.mxu0 %v426
    %1773 = vmatpush1.msra.mxu0 %v425
    %1774 = vmatprep.subr.mxu0 %v430
    %1775 = vmatpush1.msra.mxu0 %v429
    %1776 = vmatprep.subr.mxu0 %v434
    %1777 = vmatpush1.msra.mxu0 %v433
    %1778 = vmatprep.subr.mxu0 %v438
    %1779 = vmatpush1.msra.mxu0 %v437
    %1780 = vmatprep.subr.mxu0 %v442
    %1781 = vmatpush1.msra.mxu0 %v441
    %1782 = vmatprep.subr.mxu0 %v446
    %1783 = vmatpush1.msra.mxu0 %v445
    %1784 = vmatprep.subr.mxu0 %v450
    %1785 = vmatpush1.msra.mxu0 %v449
    %1786 = vmatprep.subr.mxu0 %v454
    %1787 = vmatpush1.msra.mxu0 %v453
    %1788 = vmatprep.subr.mxu0 %v458
    %1789 = vmatpush1.msra.mxu0 %v457
    %1790 = vmatprep.subr.mxu0 %v462
    %1791 = vmatpush1.msra.mxu0 %v461
    %1792 = vmatprep.subr.mxu0 %v466
    %1793 = vmatpush1.msra.mxu0 %v465
    %1794 = vmatprep.subr.mxu0 %v470
    %1795 = vmatpush1.msra.mxu0 %v469
    %1796 = vmatprep.subr.mxu0 %v474
    %1797 = vmatpush1.msra.mxu0 %v473
    %1798 = vmatprep.subr.mxu0 %v478
    %1799 = vmatpush1.msra.mxu0 %v477
    %1800 = vmatprep.subr.mxu0 0.0
    %1801 = vmatpush1.msra.mxu0 0.0
    %1802 = vmatprep.subr.mxu0 0.0
    %1803 = vmatpush1.msra.mxu0 0.0
    %1804 = vmatprep.subr.mxu0 0.0
    %1805 = vmatpush1.msra.mxu0 0.0
    %1806 = vmatprep.subr.mxu0 0.0
    %1807 = vmatpush1.msra.mxu0 0.0
    %1808 = vmatprep.subr.mxu0 0.0
    %1809 = vmatpush1.msra.mxu0 0.0
    %1810 = vmatprep.subr.mxu0 0.0
    %1811 = vmatpush1.msra.mxu0 0.0
    %1812 = vmatprep.subr.mxu0 0.0
    %1813 = vmatpush1.msra.mxu0 0.0
    %1814 = vmatprep.subr.mxu0 0.0
    %1815 = vmatpush1.msra.mxu0 0.0
    %1816 = vmatprep.subr.mxu0 0.0
    %1817 = vmatpush1.msra.mxu0 0.0
    %1818 = vmatprep.subr.mxu0 0.0
    %1819 = vmatpush1.msra.mxu0 0.0
    %1820 = vmatprep.subr.mxu0 0.0
    %1821 = vmatpush1.msra.mxu0 0.0
    %1822 = vmatprep.subr.mxu0 0.0
    %1823 = vmatpush1.msra.mxu0 0.0
    %1824 = vmatprep.subr.mxu0 0.0
    %1825 = vmatpush1.msra.mxu0 0.0
    %1826 = vmatprep.subr.mxu0 0.0
    %1827 = vmatpush1.msra.mxu0 0.0
    %1828 = vmatprep.subr.mxu0 0.0
    %1829 = vmatpush1.msra.mxu0 0.0
    %1830 = vmatprep.subr.mxu0 0.0
    %1831 = vmatpush1.msra.mxu0 0.0
    %1832 = vmatprep.mubr.f32.mxu0 0.0
    %1833 = vmatmul.mubr.f32.gmra.mrb[0].mxu0 %v1692
    %v1834 = vpop.f32.mrb[0].mxu0
    %v1835 = vadd.f32 0.0, %v1834
    %v1836 = vpop.f32.mrb[0].mxu0
    %v1837 = vadd.f32 0.0, %v1836
    %1838 = vdwg.mxu0
    %v1839 = vadd.f32 %v1693, %v1764
    %v1840 = vadd.f32 %v1694, %v1766
    %v1841 = vadd.f32 %v1695, %v1835
    %v1842 = vadd.f32 %v1696, %v1837
    %v1843 = vxor.u32 %v1839, 2147483648
    %v1844 = vmul.f32 %v1843, 1.442695
    %v1845 = vpow.pop %v1844
    %v1846 = vadd.f32 %v1845, 1.0
    %v1847 = vrcp.pop %v1846
    %v1848 = vmul.f32 1.0, %v1847
    %v1849 = vxor.u32 %v1840, 2147483648
    %v1850 = vmul.f32 %v1849, 1.442695
    %v1851 = vpow.pop %v1850
    %v1852 = vadd.f32 %v1851, 1.0
    %v1853 = vrcp.pop %v1852
    %v1854 = vmul.f32 1.0, %v1853
    %v1855 = vtanh.pop %v1841
    %v1856 = vxor.u32 %v1842, 2147483648
    %v1857 = vmul.f32 %v1856, 1.442695
    %v1858 = vpow.pop %v1857
    %v1859 = vadd.f32 %v1858, 1.0
    %v1860 = vrcp.pop %v1859
    %v1861 = vmul.f32 1.0, %v1860
    %v1862 = vmul.f32 %v1854, %v1690
    %v1863 = vmul.f32 %v1848, %v1855
    %v1864 = vadd.f32 %v1862, %v1863
    %v1865 = vtanh.pop %v1864
    %v1866 = vmul.f32 %v1861, %v1865
    %1867 = vst [vmem:[#allocation9] sm:$0xff] %v1866
    // Predicated region
    $region30: #{tpu_custom_call.1} parent=1 // pred_check
      _
    $region31: #{tpu_custom_call.1} parent=1 // pred_check_branch
      %1869 = sbr.rel (0) target = $region33
    $region32: #{tpu_custom_call.1} parent=1 // pred_region
      %s1871 = ssub.s32 128, 128
      %1872 = vsyncadd [#allocation5], %s1871
      %s1874 = sshll.u32 [#allocation9], 4
      %s1875 = int_to_ptr.vmem [resolvable:$true] %s1874
      %1877 = dma.vmem_to_hbm [thread:$0]  %s1875, 128, %s4, [#allocation5]
    $region33: #{tpu_custom_call.1} parent=1 // pred_fallthru
      _
    // Predicated region
    $region34: #{tpu_custom_call.1} parent=1 // pred_check
      _
    $region35: #{tpu_custom_call.1} parent=1 // pred_check_branch
      %1879 = sbr.rel (0) target = $region37
    $region36: #{tpu_custom_call.1} parent=1 // pred_region
      %1880 = dma.done [#allocation5], 128
    $region37: #{tpu_custom_call.1} parent=1 // pred_fallthru
      _
    %1881 = vsyncpa [#allocation4], 1
    %1882 = vsyncpa [#allocation7], 1
    %1883 = vsyncpa [#allocation5], 1

</llo_original>
